<compile_context>
chip_gen: v7x
topology: tpu7x:2x2x1
jax: 0.10.0
libtpu: 0.0.40
codegen_flags: <defaults>
</compile_context>

<pallas_src>
import functools

import jax
import jax.numpy as jnp
import numpy as np
from jax import lax
from jax.experimental import pallas as pl
from jax.experimental.pallas import tpu as pltpu

BOHR = 0.5291772105638411  # ase.units.Bohr (Angstrom per Bohr)


def _round_up(x, m):
    return ((x + m - 1) // m) * m


def _pairwise_expansion_kernel(target_ref, source_ref,
                               dist_ref, dir_ref, exp_ref,
                               *, cutoff, features, epsilon, distance_mul, chunk):
    """One (tt, ts) tile of pairwise distance / direction / sinc expansion."""
    tt = dist_ref.shape[0]
    n_chunks = tt // chunk

    # Loop-invariant source coordinates ([1, ts] rows), loaded once.
    sx = source_ref[0:1, :]
    sy = source_ref[1:2, :]
    sz = source_ref[2:3, :]

    omega = jnp.pi / cutoff  # python float; stays f32 under weak typing

    def _recip(x):
        # EUP approx reciprocal + one Newton refinement (~1e-7 rel error):
        # keeps both divides off the VALU critical path.
        y = pl.reciprocal(x, approx=True)
        return y * (2.0 - x * y)

    def chunk_body(c, carry):
        # Process `chunk` target rows at a time so every carried value of the
        # feature recurrence is only [chunk, ts] (a few vregs) -> no spills.
        r = pl.multiple_of(c * chunk, chunk)
        t = target_ref[pl.ds(r, chunk), :]               # [chunk, 3]

        dx = t[:, 0:1] - sx                               # [chunk, ts]
        dy = t[:, 1:2] - sy
        dz = t[:, 2:3] - sz

        dist = jnp.sqrt(dx * dx + dy * dy + dz * dz)
        dist_ref[pl.ds(r, chunk), :] = dist

        inv_safe = _recip(dist + epsilon)
        dir_ref[0, pl.ds(r, chunk), :] = dx * inv_safe
        dir_ref[1, pl.ds(r, chunk), :] = dy * inv_safe
        dir_ref[2, pl.ds(r, chunk), :] = dz * inv_safe

        # sinc expansion: sin(pi*n*f/cutoff)/f, n = 1..features, via the Chebyshev
        # recurrence sin((n+1)x) = 2*cos(x)*sin(nx) - sin((n-1)x).
        f = dist * distance_mul + epsilon
        inv_f = _recip(f)
        x = omega * f
        s1 = jnp.sin(x)
        two_c1 = 2.0 * jnp.cos(x)

        exp_ref[0, pl.ds(r, chunk), :] = s1 * inv_f        # n = 1
        if features > 1:
            s_prev = s1
            s_cur = two_c1 * s1                            # sin(2x)  (sin(0) term is 0)
            exp_ref[1, pl.ds(r, chunk), :] = s_cur * inv_f
            for n in range(2, features):                   # small static unroll per chunk
                s_next = two_c1 * s_cur - s_prev           # sin((n+1)x)
                exp_ref[n, pl.ds(r, chunk), :] = s_next * inv_f
                s_prev = s_cur
                s_cur = s_next
        return carry

    lax.fori_loop(0, n_chunks, chunk_body, 0, unroll=True)


def deepdft_eqv_expansion(source, target, *, cut_dist_bohr, features=20,
                          self_send=True, epsilon=1e-11, distance_mul=BOHR,
                          channels_last=True):
    """source: [N_s, 3] f32, target: [N_t, 3] f32 (positions).

    Returns (dist, direction, mask, expansion).  With channels_last=True (default,
    PyTorch-module layout) direction is [N_t, N_s, 3] and expansion is
    [N_t, N_s, features]; with channels_last=False the lane-dense kernel layouts
    [3, N_t, N_s] / [features, N_t, N_s] are returned, skipping an extra HBM pass.
    """
    source = jnp.asarray(source, jnp.float32)
    target = jnp.asarray(target, jnp.float32)
    n_s = source.shape[0]
    n_t = target.shape[0]

    # Tile sizes: sublane-aligned targets, lane-aligned sources.  Per grid step the
    # outputs are (features + 4) lane-dense f32 planes; (256, 256) tiles are ~6.3 MiB
    # per buffer / ~12.6 MiB double-buffered, within the 32 MiB scoped VMEM budget
    # requested below on every generation (v5e/v6e/v7x).
    tt = min(256, _round_up(n_t, 8))
    ts = min(256, _round_up(n_s, 128))
    # If the whole problem fits one tile, split the target axis so megacore
    # (two TensorCores on v7x) has >= 2 parallel blocks to shard.
    if _round_up(n_t, tt) == tt and _round_up(n_s, ts) == ts and tt > 8:
        tt = _round_up(tt // 2, 8)
    t_pad = _round_up(n_t, tt)
    s_pad = _round_up(n_s, ts)
    # In-kernel row chunk: keeps recurrence state at [chunk, ts] (a few vregs).
    chunk = 16 if tt % 16 == 0 else 8

    if t_pad != n_t:
        target = jnp.pad(target, ((0, t_pad - n_t), (0, 0)))
    if s_pad != n_s:
        source = jnp.pad(source, ((0, s_pad - n_s), (0, 0)))
    src_t = source.T  # [3, S_pad]

    kernel = functools.partial(
        _pairwise_expansion_kernel,
        cutoff=float(cut_dist_bohr),
        features=int(features),
        epsilon=float(epsilon),
        distance_mul=float(distance_mul),
        chunk=int(chunk),
    )

    grid = (t_pad // tt, s_pad // ts)

    out_shape = (
        jax.ShapeDtypeStruct((t_pad, s_pad), jnp.float32),            # dist
        jax.ShapeDtypeStruct((3, t_pad, s_pad), jnp.float32),         # direction (coord-major)
        jax.ShapeDtypeStruct((features, t_pad, s_pad), jnp.float32),  # expansion (feature-major)
    )

    n_pairs = t_pad * s_pad
    cost = pl.CostEstimate(
        flops=int(n_pairs * (25 + 4 * features)),
        transcendentals=int(5 * n_pairs),  # sqrt, sin, cos, 2 approx reciprocals
        bytes_accessed=int(4 * (3 * (t_pad + s_pad) + (features + 4) * n_pairs)),
    )

    dist_p, direction_cm, exp_fm = pl.pallas_call(
        kernel,
        grid=grid,
        in_specs=[
            pl.BlockSpec((tt, 3), lambda i, j: (i, 0)),
            pl.BlockSpec((3, ts), lambda i, j: (0, j)),
        ],
        out_specs=(
            pl.BlockSpec((tt, ts), lambda i, j: (i, j)),
            pl.BlockSpec((3, tt, ts), lambda i, j: (0, i, j)),
            pl.BlockSpec((features, tt, ts), lambda i, j: (0, i, j)),
        ),
        out_shape=out_shape,
        compiler_params=pltpu.CompilerParams(
            dimension_semantics=("parallel", "parallel"),
            vmem_limit_bytes=32 * 1024 * 1024),
        cost_estimate=cost,
    )(target, src_t)

    # Strip padding.
    dist = dist_p[:n_t, :n_s]
    direction_cm = direction_cm[:, :n_t, :n_s]
    exp_fm = exp_fm[:, :n_t, :n_s]

    # Mask derived from dist here (one compare) instead of a kernel f32 plane +
    # wrapper bool cast: fewer HBM bytes, same semantics.
    mask = dist < cut_dist_bohr
    if not self_send:
        mask = jnp.logical_and(mask, dist > 0.0)

    if channels_last:
        # Canonical PyTorch-module layout.  NOTE: extra full HBM pass over the
        # largest tensors; performance-sensitive consumers should pass
        # channels_last=False and read the lane-dense layouts directly.
        direction = jnp.transpose(direction_cm, (1, 2, 0))    # [N_t, N_s, 3]
        expansion = jnp.transpose(exp_fm, (1, 2, 0))          # [N_t, N_s, features]
    else:
        direction = direction_cm
        expansion = exp_fm
    return dist, direction, mask, expansion


def _reference(source, target, *, cut_dist_bohr, features, epsilon, distance_mul, self_send):
    diff = target[:, None, :] - source[None, :, :]               # [N_t, N_s, 3]
    dist = jnp.sqrt(jnp.sum(diff * diff, axis=-1))               # [N_t, N_s]
    direction = diff / (dist[..., None] + epsilon)
    mask = dist < cut_dist_bohr
    if not self_send:
        mask = jnp.logical_and(mask, dist > 0.0)
    f = dist * distance_mul + epsilon
    n = jnp.arange(1, features + 1, dtype=jnp.float32)
    expansion = jnp.sin(jnp.pi * n * f[..., None] / cut_dist_bohr) / f[..., None]
    return dist, direction, mask, expansion


def _check(source, target, *, cut, features, self_send, channels_last=True):
    outs = deepdft_eqv_expansion(source, target, cut_dist_bohr=cut,
                                 features=features, self_send=self_send,
                                 channels_last=channels_last)
    jax.block_until_ready(outs)
    dist, direction, mask, expansion = outs

    r_dist, r_dir, r_mask, r_exp = _reference(
        source, target, cut_dist_bohr=cut, features=features,
        epsilon=1e-11, distance_mul=BOHR, self_send=self_send)
    if not channels_last:
        r_dir = jnp.transpose(r_dir, (2, 0, 1))
        r_exp = jnp.transpose(r_exp, (2, 0, 1))

    np.testing.assert_allclose(np.asarray(dist), np.asarray(r_dist), rtol=2e-4, atol=2e-4)
    np.testing.assert_allclose(np.asarray(direction), np.asarray(r_dir), rtol=2e-4, atol=2e-4)
    np.testing.assert_allclose(np.asarray(expansion), np.asarray(r_exp), rtol=3e-4, atol=3e-4)

    # Mask must match except (possibly) exactly at the cutoff boundary, where 1-ulp
    # differences in the distance computation order could legitimately flip the bit.
    m_k = np.asarray(mask)
    m_r = np.asarray(r_mask)
    d_r = np.asarray(r_dist)
    disagree = m_k != m_r
    assert not np.any(disagree & (np.abs(d_r - cut) > 1e-4)), \
        "mask mismatch away from cutoff boundary"


if __name__ == "__main__":
    key = jax.random.PRNGKey(0)
    k1, k2, k3, k4 = jax.random.split(key, 4)

    FEATURES = 20
    CUT = 4.0

    # Small aligned shapes: single-tile problem split along targets for megacore.
    source = jax.random.uniform(k1, (128, 3), dtype=jnp.float32) * 5.0
    target = jax.random.uniform(k2, (64, 3), dtype=jnp.float32) * 5.0
    _check(source, target, cut=CUT, features=FEATURES, self_send=True)

    # Non-aligned shapes: exercises padding, a multi-block grid and the
    # channels_last=False lane-dense fast path.
    source2 = jax.random.uniform(k3, (300, 3), dtype=jnp.float32) * 5.0
    target2 = jax.random.uniform(k4, (200, 3), dtype=jnp.float32) * 5.0
    _check(source2, target2, cut=CUT, features=FEATURES, self_send=False)
    _check(source2, target2, cut=CUT, features=FEATURES, self_send=False,
           channels_last=False)

    print("KERNEL_OK")
</pallas_src>

<mosaic_0001>
module attributes {stable_mosaic.version = 11 : i64} {
  func.func @_pairwise_expansion_kernel(%arg0: i32, %arg1: i32, %arg2: memref<32x3xf32, #tpu.memory_space<vmem>>, %arg3: memref<3x128xf32, #tpu.memory_space<vmem>>, %arg4: memref<32x128xf32, #tpu.memory_space<vmem>>, %arg5: memref<3x32x128xf32, #tpu.memory_space<vmem>>, %arg6: memref<20x32x128xf32, #tpu.memory_space<vmem>>) attributes {dimension_semantics = [#tpu.dimension_semantics<parallel>, #tpu.dimension_semantics<parallel>], iteration_bounds = array<i64: 2, 1>, scalar_prefetch = 0 : i64, scratch_operands = 0 : i64, tpu.core_type = #tpu.core_type<tc>, window_params = [{transform_indices = @transform_0, window_bounds = array<i64: 32, 3>}, {transform_indices = @transform_1, window_bounds = array<i64: 3, 128>}, {transform_indices = @transform_2, window_bounds = array<i64: 32, 128>}, {transform_indices = @transform_3, window_bounds = array<i64: 3, 32, 128>}, {transform_indices = @transform_4, window_bounds = array<i64: 20, 32, 128>}]} {
    %c0 = arith.constant 0 : index
    %c0_0 = arith.constant 0 : index
    %0 = vector.load %arg3[%c0, %c0_0] : memref<3x128xf32, #tpu.memory_space<vmem>>, vector<1x128xf32>
    %c1 = arith.constant 1 : index
    %c0_1 = arith.constant 0 : index
    %1 = vector.load %arg3[%c1, %c0_1] : memref<3x128xf32, #tpu.memory_space<vmem>>, vector<1x128xf32>
    %c2 = arith.constant 2 : index
    %c0_2 = arith.constant 0 : index
    %2 = vector.load %arg3[%c2, %c0_2] : memref<3x128xf32, #tpu.memory_space<vmem>>, vector<1x128xf32>
    %c0_i32 = arith.constant 0 : i32
    %c16_i32 = arith.constant 16 : i32
    %3 = arith.muli %c0_i32, %c16_i32 : i32
    %4 = tpu.assume_multiple %3, 16 : i32
    %5 = arith.index_cast %4 : i32 to index
    %c0_3 = arith.constant 0 : index
    %6 = vector.load %arg2[%5, %c0_3] : memref<32x3xf32, #tpu.memory_space<vmem>>, vector<16x3xf32>
    %7 = vector.extract_strided_slice %6 {offsets = [0, 0], sizes = [16, 1], strides = [1, 1]} : vector<16x3xf32> to vector<16x1xf32>
    %8 = vector.broadcast %7 : vector<16x1xf32> to vector<16x128xf32>
    %9 = vector.broadcast %0 : vector<1x128xf32> to vector<16x128xf32>
    %10 = arith.subf %8, %9 : vector<16x128xf32>
    %11 = vector.extract_strided_slice %6 {offsets = [0, 1], sizes = [16, 1], strides = [1, 1]} : vector<16x3xf32> to vector<16x1xf32>
    %12 = vector.broadcast %11 : vector<16x1xf32> to vector<16x128xf32>
    %13 = vector.broadcast %1 : vector<1x128xf32> to vector<16x128xf32>
    %14 = arith.subf %12, %13 : vector<16x128xf32>
    %15 = vector.extract_strided_slice %6 {offsets = [0, 2], sizes = [16, 1], strides = [1, 1]} : vector<16x3xf32> to vector<16x1xf32>
    %16 = vector.broadcast %15 : vector<16x1xf32> to vector<16x128xf32>
    %17 = vector.broadcast %2 : vector<1x128xf32> to vector<16x128xf32>
    %18 = arith.subf %16, %17 : vector<16x128xf32>
    %19 = arith.mulf %10, %10 : vector<16x128xf32>
    %20 = arith.mulf %14, %14 : vector<16x128xf32>
    %21 = arith.addf %19, %20 : vector<16x128xf32>
    %22 = arith.mulf %18, %18 : vector<16x128xf32>
    %23 = arith.addf %21, %22 : vector<16x128xf32>
    %24 = math.sqrt %23 : vector<16x128xf32>
    %25 = arith.index_cast %4 : i32 to index
    %c0_4 = arith.constant 0 : index
    %26 = vector.load %arg4[%25, %c0_4] : memref<32x128xf32, #tpu.memory_space<vmem>>, vector<16x128xf32>
    tpu.vector_store %arg4[%25, %c0_4], %24 {strides = array<i32>} : memref<32x128xf32, #tpu.memory_space<vmem>>, vector<16x128xf32>,
    %cst = arith.constant 9.99999996E-12 : f32
    %27 = vector.broadcast %cst : f32 to vector<16x128xf32>
    %28 = arith.addf %24, %27 : vector<16x128xf32>
    %29 = tpu.reciprocal %28 {approx = true} : vector<16x128xf32> -> vector<16x128xf32>
    %30 = arith.mulf %28, %29 : vector<16x128xf32>
    %cst_5 = arith.constant 2.000000e+00 : f32
    %31 = vector.broadcast %cst_5 : f32 to vector<16x128xf32>
    %32 = arith.subf %31, %30 : vector<16x128xf32>
    %33 = arith.mulf %29, %32 : vector<16x128xf32>
    %34 = arith.mulf %10, %33 : vector<16x128xf32>
    %c0_6 = arith.constant 0 : index
    %35 = arith.index_cast %4 : i32 to index
    %c0_7 = arith.constant 0 : index
    %36 = vector.load %arg5[%c0_6, %35, %c0_7] : memref<3x32x128xf32, #tpu.memory_space<vmem>>, vector<1x16x128xf32>
    %37 = vector.shape_cast %36 : vector<1x16x128xf32> to vector<16x128xf32>
    %38 = vector.shape_cast %34 : vector<16x128xf32> to vector<1x16x128xf32>
    tpu.vector_store %arg5[%c0_6, %35, %c0_7], %38 {strides = array<i32>} : memref<3x32x128xf32, #tpu.memory_space<vmem>>, vector<1x16x128xf32>,
    %39 = arith.mulf %14, %33 : vector<16x128xf32>
    %c1_8 = arith.constant 1 : index
    %40 = arith.index_cast %4 : i32 to index
    %c0_9 = arith.constant 0 : index
    %41 = vector.load %arg5[%c1_8, %40, %c0_9] : memref<3x32x128xf32, #tpu.memory_space<vmem>>, vector<1x16x128xf32>
    %42 = vector.shape_cast %41 : vector<1x16x128xf32> to vector<16x128xf32>
    %43 = vector.shape_cast %39 : vector<16x128xf32> to vector<1x16x128xf32>
    tpu.vector_store %arg5[%c1_8, %40, %c0_9], %43 {strides = array<i32>} : memref<3x32x128xf32, #tpu.memory_space<vmem>>, vector<1x16x128xf32>,
    %44 = arith.mulf %18, %33 : vector<16x128xf32>
    %c2_10 = arith.constant 2 : index
    %45 = arith.index_cast %4 : i32 to index
    %c0_11 = arith.constant 0 : index
    %46 = vector.load %arg5[%c2_10, %45, %c0_11] : memref<3x32x128xf32, #tpu.memory_space<vmem>>, vector<1x16x128xf32>
    %47 = vector.shape_cast %46 : vector<1x16x128xf32> to vector<16x128xf32>
    %48 = vector.shape_cast %44 : vector<16x128xf32> to vector<1x16x128xf32>
    tpu.vector_store %arg5[%c2_10, %45, %c0_11], %48 {strides = array<i32>} : memref<3x32x128xf32, #tpu.memory_space<vmem>>, vector<1x16x128xf32>,
    %cst_12 = arith.constant 0.529177189 : f32
    %49 = vector.broadcast %cst_12 : f32 to vector<16x128xf32>
    %50 = arith.mulf %24, %49 : vector<16x128xf32>
    %cst_13 = arith.constant 9.99999996E-12 : f32
    %51 = vector.broadcast %cst_13 : f32 to vector<16x128xf32>
    %52 = arith.addf %50, %51 : vector<16x128xf32>
    %53 = tpu.reciprocal %52 {approx = true} : vector<16x128xf32> -> vector<16x128xf32>
    %54 = arith.mulf %52, %53 : vector<16x128xf32>
    %cst_14 = arith.constant 2.000000e+00 : f32
    %55 = vector.broadcast %cst_14 : f32 to vector<16x128xf32>
    %56 = arith.subf %55, %54 : vector<16x128xf32>
    %57 = arith.mulf %53, %56 : vector<16x128xf32>
    %cst_15 = arith.constant 0.785398185 : f32
    %58 = vector.broadcast %cst_15 : f32 to vector<16x128xf32>
    %59 = arith.mulf %58, %52 : vector<16x128xf32>
    %60 = math.sin %59 : vector<16x128xf32>
    %61 = math.cos %59 : vector<16x128xf32>
    %cst_16 = arith.constant 2.000000e+00 : f32
    %62 = vector.broadcast %cst_16 : f32 to vector<16x128xf32>
    %63 = arith.mulf %62, %61 : vector<16x128xf32>
    %64 = arith.mulf %60, %57 : vector<16x128xf32>
    %c0_17 = arith.constant 0 : index
    %65 = arith.index_cast %4 : i32 to index
    %c0_18 = arith.constant 0 : index
    %66 = vector.load %arg6[%c0_17, %65, %c0_18] : memref<20x32x128xf32, #tpu.memory_space<vmem>>, vector<1x16x128xf32>
    %67 = vector.shape_cast %66 : vector<1x16x128xf32> to vector<16x128xf32>
    %68 = vector.shape_cast %64 : vector<16x128xf32> to vector<1x16x128xf32>
    tpu.vector_store %arg6[%c0_17, %65, %c0_18], %68 {strides = array<i32>} : memref<20x32x128xf32, #tpu.memory_space<vmem>>, vector<1x16x128xf32>,
    %69 = arith.mulf %63, %60 : vector<16x128xf32>
    %70 = arith.mulf %69, %57 : vector<16x128xf32>
    %c1_19 = arith.constant 1 : index
    %71 = arith.index_cast %4 : i32 to index
    %c0_20 = arith.constant 0 : index
    %72 = vector.load %arg6[%c1_19, %71, %c0_20] : memref<20x32x128xf32, #tpu.memory_space<vmem>>, vector<1x16x128xf32>
    %73 = vector.shape_cast %72 : vector<1x16x128xf32> to vector<16x128xf32>
    %74 = vector.shape_cast %70 : vector<16x128xf32> to vector<1x16x128xf32>
    tpu.vector_store %arg6[%c1_19, %71, %c0_20], %74 {strides = array<i32>} : memref<20x32x128xf32, #tpu.memory_space<vmem>>, vector<1x16x128xf32>,
    %75 = arith.mulf %63, %69 : vector<16x128xf32>
    %76 = arith.subf %75, %60 : vector<16x128xf32>
    %77 = arith.mulf %76, %57 : vector<16x128xf32>
    %c2_21 = arith.constant 2 : index
    %78 = arith.index_cast %4 : i32 to index
    %c0_22 = arith.constant 0 : index
    %79 = vector.load %arg6[%c2_21, %78, %c0_22] : memref<20x32x128xf32, #tpu.memory_space<vmem>>, vector<1x16x128xf32>
    %80 = vector.shape_cast %79 : vector<1x16x128xf32> to vector<16x128xf32>
    %81 = vector.shape_cast %77 : vector<16x128xf32> to vector<1x16x128xf32>
    tpu.vector_store %arg6[%c2_21, %78, %c0_22], %81 {strides = array<i32>} : memref<20x32x128xf32, #tpu.memory_space<vmem>>, vector<1x16x128xf32>,
    %82 = arith.mulf %63, %76 : vector<16x128xf32>
    %83 = arith.subf %82, %69 : vector<16x128xf32>
    %84 = arith.mulf %83, %57 : vector<16x128xf32>
    %c3 = arith.constant 3 : index
    %85 = arith.index_cast %4 : i32 to index
    %c0_23 = arith.constant 0 : index
    %86 = vector.load %arg6[%c3, %85, %c0_23] : memref<20x32x128xf32, #tpu.memory_space<vmem>>, vector<1x16x128xf32>
    %87 = vector.shape_cast %86 : vector<1x16x128xf32> to vector<16x128xf32>
    %88 = vector.shape_cast %84 : vector<16x128xf32> to vector<1x16x128xf32>
    tpu.vector_store %arg6[%c3, %85, %c0_23], %88 {strides = array<i32>} : memref<20x32x128xf32, #tpu.memory_space<vmem>>, vector<1x16x128xf32>,
    %89 = arith.mulf %63, %83 : vector<16x128xf32>
    %90 = arith.subf %89, %76 : vector<16x128xf32>
    %91 = arith.mulf %90, %57 : vector<16x128xf32>
    %c4 = arith.constant 4 : index
    %92 = arith.index_cast %4 : i32 to index
    %c0_24 = arith.constant 0 : index
    %93 = vector.load %arg6[%c4, %92, %c0_24] : memref<20x32x128xf32, #tpu.memory_space<vmem>>, vector<1x16x128xf32>
    %94 = vector.shape_cast %93 : vector<1x16x128xf32> to vector<16x128xf32>
    %95 = vector.shape_cast %91 : vector<16x128xf32> to vector<1x16x128xf32>
    tpu.vector_store %arg6[%c4, %92, %c0_24], %95 {strides = array<i32>} : memref<20x32x128xf32, #tpu.memory_space<vmem>>, vector<1x16x128xf32>,
    %96 = arith.mulf %63, %90 : vector<16x128xf32>
    %97 = arith.subf %96, %83 : vector<16x128xf32>
    %98 = arith.mulf %97, %57 : vector<16x128xf32>
    %c5 = arith.constant 5 : index
    %99 = arith.index_cast %4 : i32 to index
    %c0_25 = arith.constant 0 : index
    %100 = vector.load %arg6[%c5, %99, %c0_25] : memref<20x32x128xf32, #tpu.memory_space<vmem>>, vector<1x16x128xf32>
    %101 = vector.shape_cast %100 : vector<1x16x128xf32> to vector<16x128xf32>
    %102 = vector.shape_cast %98 : vector<16x128xf32> to vector<1x16x128xf32>
    tpu.vector_store %arg6[%c5, %99, %c0_25], %102 {strides = array<i32>} : memref<20x32x128xf32, #tpu.memory_space<vmem>>, vector<1x16x128xf32>,
    %103 = arith.mulf %63, %97 : vector<16x128xf32>
    %104 = arith.subf %103, %90 : vector<16x128xf32>
    %105 = arith.mulf %104, %57 : vector<16x128xf32>
    %c6 = arith.constant 6 : index
    %106 = arith.index_cast %4 : i32 to index
    %c0_26 = arith.constant 0 : index
    %107 = vector.load %arg6[%c6, %106, %c0_26] : memref<20x32x128xf32, #tpu.memory_space<vmem>>, vector<1x16x128xf32>
    %108 = vector.shape_cast %107 : vector<1x16x128xf32> to vector<16x128xf32>
    %109 = vector.shape_cast %105 : vector<16x128xf32> to vector<1x16x128xf32>
    tpu.vector_store %arg6[%c6, %106, %c0_26], %109 {strides = array<i32>} : memref<20x32x128xf32, #tpu.memory_space<vmem>>, vector<1x16x128xf32>,
    %110 = arith.mulf %63, %104 : vector<16x128xf32>
    %111 = arith.subf %110, %97 : vector<16x128xf32>
    %112 = arith.mulf %111, %57 : vector<16x128xf32>
    %c7 = arith.constant 7 : index
    %113 = arith.index_cast %4 : i32 to index
    %c0_27 = arith.constant 0 : index
    %114 = vector.load %arg6[%c7, %113, %c0_27] : memref<20x32x128xf32, #tpu.memory_space<vmem>>, vector<1x16x128xf32>
    %115 = vector.shape_cast %114 : vector<1x16x128xf32> to vector<16x128xf32>
    %116 = vector.shape_cast %112 : vector<16x128xf32> to vector<1x16x128xf32>
    tpu.vector_store %arg6[%c7, %113, %c0_27], %116 {strides = array<i32>} : memref<20x32x128xf32, #tpu.memory_space<vmem>>, vector<1x16x128xf32>,
    %117 = arith.mulf %63, %111 : vector<16x128xf32>
    %118 = arith.subf %117, %104 : vector<16x128xf32>
    %119 = arith.mulf %118, %57 : vector<16x128xf32>
    %c8 = arith.constant 8 : index
    %120 = arith.index_cast %4 : i32 to index
    %c0_28 = arith.constant 0 : index
    %121 = vector.load %arg6[%c8, %120, %c0_28] : memref<20x32x128xf32, #tpu.memory_space<vmem>>, vector<1x16x128xf32>
    %122 = vector.shape_cast %121 : vector<1x16x128xf32> to vector<16x128xf32>
    %123 = vector.shape_cast %119 : vector<16x128xf32> to vector<1x16x128xf32>
    tpu.vector_store %arg6[%c8, %120, %c0_28], %123 {strides = array<i32>} : memref<20x32x128xf32, #tpu.memory_space<vmem>>, vector<1x16x128xf32>,
    %124 = arith.mulf %63, %118 : vector<16x128xf32>
    %125 = arith.subf %124, %111 : vector<16x128xf32>
    %126 = arith.mulf %125, %57 : vector<16x128xf32>
    %c9 = arith.constant 9 : index
    %127 = arith.index_cast %4 : i32 to index
    %c0_29 = arith.constant 0 : index
    %128 = vector.load %arg6[%c9, %127, %c0_29] : memref<20x32x128xf32, #tpu.memory_space<vmem>>, vector<1x16x128xf32>
    %129 = vector.shape_cast %128 : vector<1x16x128xf32> to vector<16x128xf32>
    %130 = vector.shape_cast %126 : vector<16x128xf32> to vector<1x16x128xf32>
    tpu.vector_store %arg6[%c9, %127, %c0_29], %130 {strides = array<i32>} : memref<20x32x128xf32, #tpu.memory_space<vmem>>, vector<1x16x128xf32>,
    %131 = arith.mulf %63, %125 : vector<16x128xf32>
    %132 = arith.subf %131, %118 : vector<16x128xf32>
    %133 = arith.mulf %132, %57 : vector<16x128xf32>
    %c10 = arith.constant 10 : index
    %134 = arith.index_cast %4 : i32 to index
    %c0_30 = arith.constant 0 : index
    %135 = vector.load %arg6[%c10, %134, %c0_30] : memref<20x32x128xf32, #tpu.memory_space<vmem>>, vector<1x16x128xf32>
    %136 = vector.shape_cast %135 : vector<1x16x128xf32> to vector<16x128xf32>
    %137 = vector.shape_cast %133 : vector<16x128xf32> to vector<1x16x128xf32>
    tpu.vector_store %arg6[%c10, %134, %c0_30], %137 {strides = array<i32>} : memref<20x32x128xf32, #tpu.memory_space<vmem>>, vector<1x16x128xf32>,
    %138 = arith.mulf %63, %132 : vector<16x128xf32>
    %139 = arith.subf %138, %125 : vector<16x128xf32>
    %140 = arith.mulf %139, %57 : vector<16x128xf32>
    %c11 = arith.constant 11 : index
    %141 = arith.index_cast %4 : i32 to index
    %c0_31 = arith.constant 0 : index
    %142 = vector.load %arg6[%c11, %141, %c0_31] : memref<20x32x128xf32, #tpu.memory_space<vmem>>, vector<1x16x128xf32>
    %143 = vector.shape_cast %142 : vector<1x16x128xf32> to vector<16x128xf32>
    %144 = vector.shape_cast %140 : vector<16x128xf32> to vector<1x16x128xf32>
    tpu.vector_store %arg6[%c11, %141, %c0_31], %144 {strides = array<i32>} : memref<20x32x128xf32, #tpu.memory_space<vmem>>, vector<1x16x128xf32>,
    %145 = arith.mulf %63, %139 : vector<16x128xf32>
    %146 = arith.subf %145, %132 : vector<16x128xf32>
    %147 = arith.mulf %146, %57 : vector<16x128xf32>
    %c12 = arith.constant 12 : index
    %148 = arith.index_cast %4 : i32 to index
    %c0_32 = arith.constant 0 : index
    %149 = vector.load %arg6[%c12, %148, %c0_32] : memref<20x32x128xf32, #tpu.memory_space<vmem>>, vector<1x16x128xf32>
    %150 = vector.shape_cast %149 : vector<1x16x128xf32> to vector<16x128xf32>
    %151 = vector.shape_cast %147 : vector<16x128xf32> to vector<1x16x128xf32>
    tpu.vector_store %arg6[%c12, %148, %c0_32], %151 {strides = array<i32>} : memref<20x32x128xf32, #tpu.memory_space<vmem>>, vector<1x16x128xf32>,
    %152 = arith.mulf %63, %146 : vector<16x128xf32>
    %153 = arith.subf %152, %139 : vector<16x128xf32>
    %154 = arith.mulf %153, %57 : vector<16x128xf32>
    %c13 = arith.constant 13 : index
    %155 = arith.index_cast %4 : i32 to index
    %c0_33 = arith.constant 0 : index
    %156 = vector.load %arg6[%c13, %155, %c0_33] : memref<20x32x128xf32, #tpu.memory_space<vmem>>, vector<1x16x128xf32>
    %157 = vector.shape_cast %156 : vector<1x16x128xf32> to vector<16x128xf32>
    %158 = vector.shape_cast %154 : vector<16x128xf32> to vector<1x16x128xf32>
    tpu.vector_store %arg6[%c13, %155, %c0_33], %158 {strides = array<i32>} : memref<20x32x128xf32, #tpu.memory_space<vmem>>, vector<1x16x128xf32>,
    %159 = arith.mulf %63, %153 : vector<16x128xf32>
    %160 = arith.subf %159, %146 : vector<16x128xf32>
    %161 = arith.mulf %160, %57 : vector<16x128xf32>
    %c14 = arith.constant 14 : index
    %162 = arith.index_cast %4 : i32 to index
    %c0_34 = arith.constant 0 : index
    %163 = vector.load %arg6[%c14, %162, %c0_34] : memref<20x32x128xf32, #tpu.memory_space<vmem>>, vector<1x16x128xf32>
    %164 = vector.shape_cast %163 : vector<1x16x128xf32> to vector<16x128xf32>
    %165 = vector.shape_cast %161 : vector<16x128xf32> to vector<1x16x128xf32>
    tpu.vector_store %arg6[%c14, %162, %c0_34], %165 {strides = array<i32>} : memref<20x32x128xf32, #tpu.memory_space<vmem>>, vector<1x16x128xf32>,
    %166 = arith.mulf %63, %160 : vector<16x128xf32>
    %167 = arith.subf %166, %153 : vector<16x128xf32>
    %168 = arith.mulf %167, %57 : vector<16x128xf32>
    %c15 = arith.constant 15 : index
    %169 = arith.index_cast %4 : i32 to index
    %c0_35 = arith.constant 0 : index
    %170 = vector.load %arg6[%c15, %169, %c0_35] : memref<20x32x128xf32, #tpu.memory_space<vmem>>, vector<1x16x128xf32>
    %171 = vector.shape_cast %170 : vector<1x16x128xf32> to vector<16x128xf32>
    %172 = vector.shape_cast %168 : vector<16x128xf32> to vector<1x16x128xf32>
    tpu.vector_store %arg6[%c15, %169, %c0_35], %172 {strides = array<i32>} : memref<20x32x128xf32, #tpu.memory_space<vmem>>, vector<1x16x128xf32>,
    %173 = arith.mulf %63, %167 : vector<16x128xf32>
    %174 = arith.subf %173, %160 : vector<16x128xf32>
    %175 = arith.mulf %174, %57 : vector<16x128xf32>
    %c16 = arith.constant 16 : index
    %176 = arith.index_cast %4 : i32 to index
    %c0_36 = arith.constant 0 : index
    %177 = vector.load %arg6[%c16, %176, %c0_36] : memref<20x32x128xf32, #tpu.memory_space<vmem>>, vector<1x16x128xf32>
    %178 = vector.shape_cast %177 : vector<1x16x128xf32> to vector<16x128xf32>
    %179 = vector.shape_cast %175 : vector<16x128xf32> to vector<1x16x128xf32>
    tpu.vector_store %arg6[%c16, %176, %c0_36], %179 {strides = array<i32>} : memref<20x32x128xf32, #tpu.memory_space<vmem>>, vector<1x16x128xf32>,
    %180 = arith.mulf %63, %174 : vector<16x128xf32>
    %181 = arith.subf %180, %167 : vector<16x128xf32>
    %182 = arith.mulf %181, %57 : vector<16x128xf32>
    %c17 = arith.constant 17 : index
    %183 = arith.index_cast %4 : i32 to index
    %c0_37 = arith.constant 0 : index
    %184 = vector.load %arg6[%c17, %183, %c0_37] : memref<20x32x128xf32, #tpu.memory_space<vmem>>, vector<1x16x128xf32>
    %185 = vector.shape_cast %184 : vector<1x16x128xf32> to vector<16x128xf32>
    %186 = vector.shape_cast %182 : vector<16x128xf32> to vector<1x16x128xf32>
    tpu.vector_store %arg6[%c17, %183, %c0_37], %186 {strides = array<i32>} : memref<20x32x128xf32, #tpu.memory_space<vmem>>, vector<1x16x128xf32>,
    %187 = arith.mulf %63, %181 : vector<16x128xf32>
    %188 = arith.subf %187, %174 : vector<16x128xf32>
    %189 = arith.mulf %188, %57 : vector<16x128xf32>
    %c18 = arith.constant 18 : index
    %190 = arith.index_cast %4 : i32 to index
    %c0_38 = arith.constant 0 : index
    %191 = vector.load %arg6[%c18, %190, %c0_38] : memref<20x32x128xf32, #tpu.memory_space<vmem>>, vector<1x16x128xf32>
    %192 = vector.shape_cast %191 : vector<1x16x128xf32> to vector<16x128xf32>
    %193 = vector.shape_cast %189 : vector<16x128xf32> to vector<1x16x128xf32>
    tpu.vector_store %arg6[%c18, %190, %c0_38], %193 {strides = array<i32>} : memref<20x32x128xf32, #tpu.memory_space<vmem>>, vector<1x16x128xf32>,
    %194 = arith.mulf %63, %188 : vector<16x128xf32>
    %195 = arith.subf %194, %181 : vector<16x128xf32>
    %196 = arith.mulf %195, %57 : vector<16x128xf32>
    %c19 = arith.constant 19 : index
    %197 = arith.index_cast %4 : i32 to index
    %c0_39 = arith.constant 0 : index
    %198 = vector.load %arg6[%c19, %197, %c0_39] : memref<20x32x128xf32, #tpu.memory_space<vmem>>, vector<1x16x128xf32>
    %199 = vector.shape_cast %198 : vector<1x16x128xf32> to vector<16x128xf32>
    %200 = vector.shape_cast %196 : vector<16x128xf32> to vector<1x16x128xf32>
    tpu.vector_store %arg6[%c19, %197, %c0_39], %200 {strides = array<i32>} : memref<20x32x128xf32, #tpu.memory_space<vmem>>, vector<1x16x128xf32>,
    %c1_i32 = arith.constant 1 : i32
    %c16_i32_40 = arith.constant 16 : i32
    %201 = arith.muli %c1_i32, %c16_i32_40 : i32
    %202 = tpu.assume_multiple %201, 16 : i32
    %203 = arith.index_cast %202 : i32 to index
    %c0_41 = arith.constant 0 : index
    %204 = vector.load %arg2[%203, %c0_41] : memref<32x3xf32, #tpu.memory_space<vmem>>, vector<16x3xf32>
    %205 = vector.extract_strided_slice %204 {offsets = [0, 0], sizes = [16, 1], strides = [1, 1]} : vector<16x3xf32> to vector<16x1xf32>
    %206 = vector.broadcast %205 : vector<16x1xf32> to vector<16x128xf32>
    %207 = vector.broadcast %0 : vector<1x128xf32> to vector<16x128xf32>
    %208 = arith.subf %206, %207 : vector<16x128xf32>
    %209 = vector.extract_strided_slice %204 {offsets = [0, 1], sizes = [16, 1], strides = [1, 1]} : vector<16x3xf32> to vector<16x1xf32>
    %210 = vector.broadcast %209 : vector<16x1xf32> to vector<16x128xf32>
    %211 = vector.broadcast %1 : vector<1x128xf32> to vector<16x128xf32>
    %212 = arith.subf %210, %211 : vector<16x128xf32>
    %213 = vector.extract_strided_slice %204 {offsets = [0, 2], sizes = [16, 1], strides = [1, 1]} : vector<16x3xf32> to vector<16x1xf32>
    %214 = vector.broadcast %213 : vector<16x1xf32> to vector<16x128xf32>
    %215 = vector.broadcast %2 : vector<1x128xf32> to vector<16x128xf32>
    %216 = arith.subf %214, %215 : vector<16x128xf32>
    %217 = arith.mulf %208, %208 : vector<16x128xf32>
    %218 = arith.mulf %212, %212 : vector<16x128xf32>
    %219 = arith.addf %217, %218 : vector<16x128xf32>
    %220 = arith.mulf %216, %216 : vector<16x128xf32>
    %221 = arith.addf %219, %220 : vector<16x128xf32>
    %222 = math.sqrt %221 : vector<16x128xf32>
    %223 = arith.index_cast %202 : i32 to index
    %c0_42 = arith.constant 0 : index
    %224 = vector.load %arg4[%223, %c0_42] : memref<32x128xf32, #tpu.memory_space<vmem>>, vector<16x128xf32>
    tpu.vector_store %arg4[%223, %c0_42], %222 {strides = array<i32>} : memref<32x128xf32, #tpu.memory_space<vmem>>, vector<16x128xf32>,
    %cst_43 = arith.constant 9.99999996E-12 : f32
    %225 = vector.broadcast %cst_43 : f32 to vector<16x128xf32>
    %226 = arith.addf %222, %225 : vector<16x128xf32>
    %227 = tpu.reciprocal %226 {approx = true} : vector<16x128xf32> -> vector<16x128xf32>
    %228 = arith.mulf %226, %227 : vector<16x128xf32>
    %cst_44 = arith.constant 2.000000e+00 : f32
    %229 = vector.broadcast %cst_44 : f32 to vector<16x128xf32>
    %230 = arith.subf %229, %228 : vector<16x128xf32>
    %231 = arith.mulf %227, %230 : vector<16x128xf32>
    %232 = arith.mulf %208, %231 : vector<16x128xf32>
    %c0_45 = arith.constant 0 : index
    %233 = arith.index_cast %202 : i32 to index
    %c0_46 = arith.constant 0 : index
    %234 = vector.load %arg5[%c0_45, %233, %c0_46] : memref<3x32x128xf32, #tpu.memory_space<vmem>>, vector<1x16x128xf32>
    %235 = vector.shape_cast %234 : vector<1x16x128xf32> to vector<16x128xf32>
    %236 = vector.shape_cast %232 : vector<16x128xf32> to vector<1x16x128xf32>
    tpu.vector_store %arg5[%c0_45, %233, %c0_46], %236 {strides = array<i32>} : memref<3x32x128xf32, #tpu.memory_space<vmem>>, vector<1x16x128xf32>,
    %237 = arith.mulf %212, %231 : vector<16x128xf32>
    %c1_47 = arith.constant 1 : index
    %238 = arith.index_cast %202 : i32 to index
    %c0_48 = arith.constant 0 : index
    %239 = vector.load %arg5[%c1_47, %238, %c0_48] : memref<3x32x128xf32, #tpu.memory_space<vmem>>, vector<1x16x128xf32>
    %240 = vector.shape_cast %239 : vector<1x16x128xf32> to vector<16x128xf32>
    %241 = vector.shape_cast %237 : vector<16x128xf32> to vector<1x16x128xf32>
    tpu.vector_store %arg5[%c1_47, %238, %c0_48], %241 {strides = array<i32>} : memref<3x32x128xf32, #tpu.memory_space<vmem>>, vector<1x16x128xf32>,
    %242 = arith.mulf %216, %231 : vector<16x128xf32>
    %c2_49 = arith.constant 2 : index
    %243 = arith.index_cast %202 : i32 to index
    %c0_50 = arith.constant 0 : index
    %244 = vector.load %arg5[%c2_49, %243, %c0_50] : memref<3x32x128xf32, #tpu.memory_space<vmem>>, vector<1x16x128xf32>
    %245 = vector.shape_cast %244 : vector<1x16x128xf32> to vector<16x128xf32>
    %246 = vector.shape_cast %242 : vector<16x128xf32> to vector<1x16x128xf32>
    tpu.vector_store %arg5[%c2_49, %243, %c0_50], %246 {strides = array<i32>} : memref<3x32x128xf32, #tpu.memory_space<vmem>>, vector<1x16x128xf32>,
    %cst_51 = arith.constant 0.529177189 : f32
    %247 = vector.broadcast %cst_51 : f32 to vector<16x128xf32>
    %248 = arith.mulf %222, %247 : vector<16x128xf32>
    %cst_52 = arith.constant 9.99999996E-12 : f32
    %249 = vector.broadcast %cst_52 : f32 to vector<16x128xf32>
    %250 = arith.addf %248, %249 : vector<16x128xf32>
    %251 = tpu.reciprocal %250 {approx = true} : vector<16x128xf32> -> vector<16x128xf32>
    %252 = arith.mulf %250, %251 : vector<16x128xf32>
    %cst_53 = arith.constant 2.000000e+00 : f32
    %253 = vector.broadcast %cst_53 : f32 to vector<16x128xf32>
    %254 = arith.subf %253, %252 : vector<16x128xf32>
    %255 = arith.mulf %251, %254 : vector<16x128xf32>
    %cst_54 = arith.constant 0.785398185 : f32
    %256 = vector.broadcast %cst_54 : f32 to vector<16x128xf32>
    %257 = arith.mulf %256, %250 : vector<16x128xf32>
    %258 = math.sin %257 : vector<16x128xf32>
    %259 = math.cos %257 : vector<16x128xf32>
    %cst_55 = arith.constant 2.000000e+00 : f32
    %260 = vector.broadcast %cst_55 : f32 to vector<16x128xf32>
    %261 = arith.mulf %260, %259 : vector<16x128xf32>
    %262 = arith.mulf %258, %255 : vector<16x128xf32>
    %c0_56 = arith.constant 0 : index
    %263 = arith.index_cast %202 : i32 to index
    %c0_57 = arith.constant 0 : index
    %264 = vector.load %arg6[%c0_56, %263, %c0_57] : memref<20x32x128xf32, #tpu.memory_space<vmem>>, vector<1x16x128xf32>
    %265 = vector.shape_cast %264 : vector<1x16x128xf32> to vector<16x128xf32>
    %266 = vector.shape_cast %262 : vector<16x128xf32> to vector<1x16x128xf32>
    tpu.vector_store %arg6[%c0_56, %263, %c0_57], %266 {strides = array<i32>} : memref<20x32x128xf32, #tpu.memory_space<vmem>>, vector<1x16x128xf32>,
    %267 = arith.mulf %261, %258 : vector<16x128xf32>
    %268 = arith.mulf %267, %255 : vector<16x128xf32>
    %c1_58 = arith.constant 1 : index
    %269 = arith.index_cast %202 : i32 to index
    %c0_59 = arith.constant 0 : index
    %270 = vector.load %arg6[%c1_58, %269, %c0_59] : memref<20x32x128xf32, #tpu.memory_space<vmem>>, vector<1x16x128xf32>
    %271 = vector.shape_cast %270 : vector<1x16x128xf32> to vector<16x128xf32>
    %272 = vector.shape_cast %268 : vector<16x128xf32> to vector<1x16x128xf32>
    tpu.vector_store %arg6[%c1_58, %269, %c0_59], %272 {strides = array<i32>} : memref<20x32x128xf32, #tpu.memory_space<vmem>>, vector<1x16x128xf32>,
    %273 = arith.mulf %261, %267 : vector<16x128xf32>
    %274 = arith.subf %273, %258 : vector<16x128xf32>
    %275 = arith.mulf %274, %255 : vector<16x128xf32>
    %c2_60 = arith.constant 2 : index
    %276 = arith.index_cast %202 : i32 to index
    %c0_61 = arith.constant 0 : index
    %277 = vector.load %arg6[%c2_60, %276, %c0_61] : memref<20x32x128xf32, #tpu.memory_space<vmem>>, vector<1x16x128xf32>
    %278 = vector.shape_cast %277 : vector<1x16x128xf32> to vector<16x128xf32>
    %279 = vector.shape_cast %275 : vector<16x128xf32> to vector<1x16x128xf32>
    tpu.vector_store %arg6[%c2_60, %276, %c0_61], %279 {strides = array<i32>} : memref<20x32x128xf32, #tpu.memory_space<vmem>>, vector<1x16x128xf32>,
    %280 = arith.mulf %261, %274 : vector<16x128xf32>
    %281 = arith.subf %280, %267 : vector<16x128xf32>
    %282 = arith.mulf %281, %255 : vector<16x128xf32>
    %c3_62 = arith.constant 3 : index
    %283 = arith.index_cast %202 : i32 to index
    %c0_63 = arith.constant 0 : index
    %284 = vector.load %arg6[%c3_62, %283, %c0_63] : memref<20x32x128xf32, #tpu.memory_space<vmem>>, vector<1x16x128xf32>
    %285 = vector.shape_cast %284 : vector<1x16x128xf32> to vector<16x128xf32>
    %286 = vector.shape_cast %282 : vector<16x128xf32> to vector<1x16x128xf32>
    tpu.vector_store %arg6[%c3_62, %283, %c0_63], %286 {strides = array<i32>} : memref<20x32x128xf32, #tpu.memory_space<vmem>>, vector<1x16x128xf32>,
    %287 = arith.mulf %261, %281 : vector<16x128xf32>
    %288 = arith.subf %287, %274 : vector<16x128xf32>
    %289 = arith.mulf %288, %255 : vector<16x128xf32>
    %c4_64 = arith.constant 4 : index
    %290 = arith.index_cast %202 : i32 to index
    %c0_65 = arith.constant 0 : index
    %291 = vector.load %arg6[%c4_64, %290, %c0_65] : memref<20x32x128xf32, #tpu.memory_space<vmem>>, vector<1x16x128xf32>
    %292 = vector.shape_cast %291 : vector<1x16x128xf32> to vector<16x128xf32>
    %293 = vector.shape_cast %289 : vector<16x128xf32> to vector<1x16x128xf32>
    tpu.vector_store %arg6[%c4_64, %290, %c0_65], %293 {strides = array<i32>} : memref<20x32x128xf32, #tpu.memory_space<vmem>>, vector<1x16x128xf32>,
    %294 = arith.mulf %261, %288 : vector<16x128xf32>
    %295 = arith.subf %294, %281 : vector<16x128xf32>
    %296 = arith.mulf %295, %255 : vector<16x128xf32>
    %c5_66 = arith.constant 5 : index
    %297 = arith.index_cast %202 : i32 to index
    %c0_67 = arith.constant 0 : index
    %298 = vector.load %arg6[%c5_66, %297, %c0_67] : memref<20x32x128xf32, #tpu.memory_space<vmem>>, vector<1x16x128xf32>
    %299 = vector.shape_cast %298 : vector<1x16x128xf32> to vector<16x128xf32>
    %300 = vector.shape_cast %296 : vector<16x128xf32> to vector<1x16x128xf32>
    tpu.vector_store %arg6[%c5_66, %297, %c0_67], %300 {strides = array<i32>} : memref<20x32x128xf32, #tpu.memory_space<vmem>>, vector<1x16x128xf32>,
    %301 = arith.mulf %261, %295 : vector<16x128xf32>
    %302 = arith.subf %301, %288 : vector<16x128xf32>
    %303 = arith.mulf %302, %255 : vector<16x128xf32>
    %c6_68 = arith.constant 6 : index
    %304 = arith.index_cast %202 : i32 to index
    %c0_69 = arith.constant 0 : index
    %305 = vector.load %arg6[%c6_68, %304, %c0_69] : memref<20x32x128xf32, #tpu.memory_space<vmem>>, vector<1x16x128xf32>
    %306 = vector.shape_cast %305 : vector<1x16x128xf32> to vector<16x128xf32>
    %307 = vector.shape_cast %303 : vector<16x128xf32> to vector<1x16x128xf32>
    tpu.vector_store %arg6[%c6_68, %304, %c0_69], %307 {strides = array<i32>} : memref<20x32x128xf32, #tpu.memory_space<vmem>>, vector<1x16x128xf32>,
    %308 = arith.mulf %261, %302 : vector<16x128xf32>
    %309 = arith.subf %308, %295 : vector<16x128xf32>
    %310 = arith.mulf %309, %255 : vector<16x128xf32>
    %c7_70 = arith.constant 7 : index
    %311 = arith.index_cast %202 : i32 to index
    %c0_71 = arith.constant 0 : index
    %312 = vector.load %arg6[%c7_70, %311, %c0_71] : memref<20x32x128xf32, #tpu.memory_space<vmem>>, vector<1x16x128xf32>
    %313 = vector.shape_cast %312 : vector<1x16x128xf32> to vector<16x128xf32>
    %314 = vector.shape_cast %310 : vector<16x128xf32> to vector<1x16x128xf32>
    tpu.vector_store %arg6[%c7_70, %311, %c0_71], %314 {strides = array<i32>} : memref<20x32x128xf32, #tpu.memory_space<vmem>>, vector<1x16x128xf32>,
    %315 = arith.mulf %261, %309 : vector<16x128xf32>
    %316 = arith.subf %315, %302 : vector<16x128xf32>
    %317 = arith.mulf %316, %255 : vector<16x128xf32>
    %c8_72 = arith.constant 8 : index
    %318 = arith.index_cast %202 : i32 to index
    %c0_73 = arith.constant 0 : index
    %319 = vector.load %arg6[%c8_72, %318, %c0_73] : memref<20x32x128xf32, #tpu.memory_space<vmem>>, vector<1x16x128xf32>
    %320 = vector.shape_cast %319 : vector<1x16x128xf32> to vector<16x128xf32>
    %321 = vector.shape_cast %317 : vector<16x128xf32> to vector<1x16x128xf32>
    tpu.vector_store %arg6[%c8_72, %318, %c0_73], %321 {strides = array<i32>} : memref<20x32x128xf32, #tpu.memory_space<vmem>>, vector<1x16x128xf32>,
    %322 = arith.mulf %261, %316 : vector<16x128xf32>
    %323 = arith.subf %322, %309 : vector<16x128xf32>
    %324 = arith.mulf %323, %255 : vector<16x128xf32>
    %c9_74 = arith.constant 9 : index
    %325 = arith.index_cast %202 : i32 to index
    %c0_75 = arith.constant 0 : index
    %326 = vector.load %arg6[%c9_74, %325, %c0_75] : memref<20x32x128xf32, #tpu.memory_space<vmem>>, vector<1x16x128xf32>
    %327 = vector.shape_cast %326 : vector<1x16x128xf32> to vector<16x128xf32>
    %328 = vector.shape_cast %324 : vector<16x128xf32> to vector<1x16x128xf32>
    tpu.vector_store %arg6[%c9_74, %325, %c0_75], %328 {strides = array<i32>} : memref<20x32x128xf32, #tpu.memory_space<vmem>>, vector<1x16x128xf32>,
    %329 = arith.mulf %261, %323 : vector<16x128xf32>
    %330 = arith.subf %329, %316 : vector<16x128xf32>
    %331 = arith.mulf %330, %255 : vector<16x128xf32>
    %c10_76 = arith.constant 10 : index
    %332 = arith.index_cast %202 : i32 to index
    %c0_77 = arith.constant 0 : index
    %333 = vector.load %arg6[%c10_76, %332, %c0_77] : memref<20x32x128xf32, #tpu.memory_space<vmem>>, vector<1x16x128xf32>
    %334 = vector.shape_cast %333 : vector<1x16x128xf32> to vector<16x128xf32>
    %335 = vector.shape_cast %331 : vector<16x128xf32> to vector<1x16x128xf32>
    tpu.vector_store %arg6[%c10_76, %332, %c0_77], %335 {strides = array<i32>} : memref<20x32x128xf32, #tpu.memory_space<vmem>>, vector<1x16x128xf32>,
    %336 = arith.mulf %261, %330 : vector<16x128xf32>
    %337 = arith.subf %336, %323 : vector<16x128xf32>
    %338 = arith.mulf %337, %255 : vector<16x128xf32>
    %c11_78 = arith.constant 11 : index
    %339 = arith.index_cast %202 : i32 to index
    %c0_79 = arith.constant 0 : index
    %340 = vector.load %arg6[%c11_78, %339, %c0_79] : memref<20x32x128xf32, #tpu.memory_space<vmem>>, vector<1x16x128xf32>
    %341 = vector.shape_cast %340 : vector<1x16x128xf32> to vector<16x128xf32>
    %342 = vector.shape_cast %338 : vector<16x128xf32> to vector<1x16x128xf32>
    tpu.vector_store %arg6[%c11_78, %339, %c0_79], %342 {strides = array<i32>} : memref<20x32x128xf32, #tpu.memory_space<vmem>>, vector<1x16x128xf32>,
    %343 = arith.mulf %261, %337 : vector<16x128xf32>
    %344 = arith.subf %343, %330 : vector<16x128xf32>
    %345 = arith.mulf %344, %255 : vector<16x128xf32>
    %c12_80 = arith.constant 12 : index
    %346 = arith.index_cast %202 : i32 to index
    %c0_81 = arith.constant 0 : index
    %347 = vector.load %arg6[%c12_80, %346, %c0_81] : memref<20x32x128xf32, #tpu.memory_space<vmem>>, vector<1x16x128xf32>
    %348 = vector.shape_cast %347 : vector<1x16x128xf32> to vector<16x128xf32>
    %349 = vector.shape_cast %345 : vector<16x128xf32> to vector<1x16x128xf32>
    tpu.vector_store %arg6[%c12_80, %346, %c0_81], %349 {strides = array<i32>} : memref<20x32x128xf32, #tpu.memory_space<vmem>>, vector<1x16x128xf32>,
    %350 = arith.mulf %261, %344 : vector<16x128xf32>
    %351 = arith.subf %350, %337 : vector<16x128xf32>
    %352 = arith.mulf %351, %255 : vector<16x128xf32>
    %c13_82 = arith.constant 13 : index
    %353 = arith.index_cast %202 : i32 to index
    %c0_83 = arith.constant 0 : index
    %354 = vector.load %arg6[%c13_82, %353, %c0_83] : memref<20x32x128xf32, #tpu.memory_space<vmem>>, vector<1x16x128xf32>
    %355 = vector.shape_cast %354 : vector<1x16x128xf32> to vector<16x128xf32>
    %356 = vector.shape_cast %352 : vector<16x128xf32> to vector<1x16x128xf32>
    tpu.vector_store %arg6[%c13_82, %353, %c0_83], %356 {strides = array<i32>} : memref<20x32x128xf32, #tpu.memory_space<vmem>>, vector<1x16x128xf32>,
    %357 = arith.mulf %261, %351 : vector<16x128xf32>
    %358 = arith.subf %357, %344 : vector<16x128xf32>
    %359 = arith.mulf %358, %255 : vector<16x128xf32>
    %c14_84 = arith.constant 14 : index
    %360 = arith.index_cast %202 : i32 to index
    %c0_85 = arith.constant 0 : index
    %361 = vector.load %arg6[%c14_84, %360, %c0_85] : memref<20x32x128xf32, #tpu.memory_space<vmem>>, vector<1x16x128xf32>
    %362 = vector.shape_cast %361 : vector<1x16x128xf32> to vector<16x128xf32>
    %363 = vector.shape_cast %359 : vector<16x128xf32> to vector<1x16x128xf32>
    tpu.vector_store %arg6[%c14_84, %360, %c0_85], %363 {strides = array<i32>} : memref<20x32x128xf32, #tpu.memory_space<vmem>>, vector<1x16x128xf32>,
    %364 = arith.mulf %261, %358 : vector<16x128xf32>
    %365 = arith.subf %364, %351 : vector<16x128xf32>
    %366 = arith.mulf %365, %255 : vector<16x128xf32>
    %c15_86 = arith.constant 15 : index
    %367 = arith.index_cast %202 : i32 to index
    %c0_87 = arith.constant 0 : index
    %368 = vector.load %arg6[%c15_86, %367, %c0_87] : memref<20x32x128xf32, #tpu.memory_space<vmem>>, vector<1x16x128xf32>
    %369 = vector.shape_cast %368 : vector<1x16x128xf32> to vector<16x128xf32>
    %370 = vector.shape_cast %366 : vector<16x128xf32> to vector<1x16x128xf32>
    tpu.vector_store %arg6[%c15_86, %367, %c0_87], %370 {strides = array<i32>} : memref<20x32x128xf32, #tpu.memory_space<vmem>>, vector<1x16x128xf32>,
    %371 = arith.mulf %261, %365 : vector<16x128xf32>
    %372 = arith.subf %371, %358 : vector<16x128xf32>
    %373 = arith.mulf %372, %255 : vector<16x128xf32>
    %c16_88 = arith.constant 16 : index
    %374 = arith.index_cast %202 : i32 to index
    %c0_89 = arith.constant 0 : index
    %375 = vector.load %arg6[%c16_88, %374, %c0_89] : memref<20x32x128xf32, #tpu.memory_space<vmem>>, vector<1x16x128xf32>
    %376 = vector.shape_cast %375 : vector<1x16x128xf32> to vector<16x128xf32>
    %377 = vector.shape_cast %373 : vector<16x128xf32> to vector<1x16x128xf32>
    tpu.vector_store %arg6[%c16_88, %374, %c0_89], %377 {strides = array<i32>} : memref<20x32x128xf32, #tpu.memory_space<vmem>>, vector<1x16x128xf32>,
    %378 = arith.mulf %261, %372 : vector<16x128xf32>
    %379 = arith.subf %378, %365 : vector<16x128xf32>
    %380 = arith.mulf %379, %255 : vector<16x128xf32>
    %c17_90 = arith.constant 17 : index
    %381 = arith.index_cast %202 : i32 to index
    %c0_91 = arith.constant 0 : index
    %382 = vector.load %arg6[%c17_90, %381, %c0_91] : memref<20x32x128xf32, #tpu.memory_space<vmem>>, vector<1x16x128xf32>
    %383 = vector.shape_cast %382 : vector<1x16x128xf32> to vector<16x128xf32>
    %384 = vector.shape_cast %380 : vector<16x128xf32> to vector<1x16x128xf32>
    tpu.vector_store %arg6[%c17_90, %381, %c0_91], %384 {strides = array<i32>} : memref<20x32x128xf32, #tpu.memory_space<vmem>>, vector<1x16x128xf32>,
    %385 = arith.mulf %261, %379 : vector<16x128xf32>
    %386 = arith.subf %385, %372 : vector<16x128xf32>
    %387 = arith.mulf %386, %255 : vector<16x128xf32>
    %c18_92 = arith.constant 18 : index
    %388 = arith.index_cast %202 : i32 to index
    %c0_93 = arith.constant 0 : index
    %389 = vector.load %arg6[%c18_92, %388, %c0_93] : memref<20x32x128xf32, #tpu.memory_space<vmem>>, vector<1x16x128xf32>
    %390 = vector.shape_cast %389 : vector<1x16x128xf32> to vector<16x128xf32>
    %391 = vector.shape_cast %387 : vector<16x128xf32> to vector<1x16x128xf32>
    tpu.vector_store %arg6[%c18_92, %388, %c0_93], %391 {strides = array<i32>} : memref<20x32x128xf32, #tpu.memory_space<vmem>>, vector<1x16x128xf32>,
    %392 = arith.mulf %261, %386 : vector<16x128xf32>
    %393 = arith.subf %392, %379 : vector<16x128xf32>
    %394 = arith.mulf %393, %255 : vector<16x128xf32>
    %c19_94 = arith.constant 19 : index
    %395 = arith.index_cast %202 : i32 to index
    %c0_95 = arith.constant 0 : index
    %396 = vector.load %arg6[%c19_94, %395, %c0_95] : memref<20x32x128xf32, #tpu.memory_space<vmem>>, vector<1x16x128xf32>
    %397 = vector.shape_cast %396 : vector<1x16x128xf32> to vector<16x128xf32>
    %398 = vector.shape_cast %394 : vector<16x128xf32> to vector<1x16x128xf32>
    tpu.vector_store %arg6[%c19_94, %395, %c0_95], %398 {strides = array<i32>} : memref<20x32x128xf32, #tpu.memory_space<vmem>>, vector<1x16x128xf32>,
    %c2_i32 = arith.constant 2 : i32
    return
  }
  func.func @transform_0(%arg0: i32, %arg1: i32) -> (i32, i32) {
    %c0_i32 = arith.constant 0 : i32
    %c0_i32_0 = arith.constant 0 : i32
    return %arg0, %c0_i32 : i32, i32
  }
  func.func @transform_1(%arg0: i32, %arg1: i32) -> (i32, i32) {
    %c0_i32 = arith.constant 0 : i32
    %c0_i32_0 = arith.constant 0 : i32
    return %c0_i32, %arg1 : i32, i32
  }
  func.func @transform_2(%arg0: i32, %arg1: i32) -> (i32, i32) {
    %c0_i32 = arith.constant 0 : i32
    return %arg0, %arg1 : i32, i32
  }
  func.func @transform_3(%arg0: i32, %arg1: i32) -> (i32, i32, i32) {
    %c0_i32 = arith.constant 0 : i32
    %c0_i32_0 = arith.constant 0 : i32
    return %c0_i32, %arg0, %arg1 : i32, i32, i32
  }
  func.func @transform_4(%arg0: i32, %arg1: i32) -> (i32, i32, i32) {
    %c0_i32 = arith.constant 0 : i32
    %c0_i32_0 = arith.constant 0 : i32
    return %c0_i32, %arg0, %arg1 : i32, i32, i32
  }
}

</mosaic_0001>

<llo_original>
// kernel: tpu_custom_call.1
$region0: #{tpu_custom_call.1}
  #allocation0 [shape = 'u32[]', space=smem, size = 0x4, offset = 0x4, fixed_abs, tag = 'smem constant byte address 0x4 - core index']
  #allocation1 [shape = 'u32[144,128]{1,0:T(1,128)}', space=vmem, size = 0x12000, scoped, tag = 'internal scratch']
  #allocation7 [shape = 's32[]', space=sflag, size = 0x4, offset = 0, fixed_abs, tag = 'sflag constant byte address 0x0 - dummy sync flag']
  #allocation9 [shape = 's32[]', space=sflag, size = 0x4, offset = 0, fixed_abs, tag = 'sflag constant byte address 0x0 - dummy sync flag']
  %s0 = inlined_call_operand.vmem [shape: f32[64,3], index: 0, kind: input, shape index: {}]
  %s1 = inlined_call_operand.vmem [shape: f32[3,128], index: 1, kind: input, shape index: {}]
  %s2 = inlined_call_operand.hbm [shape: f32[64,128], index: 2, kind: output, shape index: {0}]
  %s3 = inlined_call_operand.hbm [shape: f32[3,64,128], index: 3, kind: output, shape index: {1}]
  %s4 = inlined_call_operand.hbm [shape: f32[20,64,128], index: 4, kind: output, shape index: {2}]
  %5 = xla_tuple %s2, %s3, %s4
  %s6 = sld [smem:[#allocation0]]
  $region57: #{tpu_custom_call.1} parent=0
    _
  %s8 = ssub.s32 1, %s6
  %s9 = scalar_select 0, %s8, %s6
  $region1: #{tpu_custom_call.1} parent=0
    #allocation2 [shape = 'u8[32768]{0}', space=vmem, size = 0x8000, scoped, tag = 'output window, operand 0']
    #allocation3 [shape = 's32[2]{0}', space=sflag, size = 0x8, scoped, tag = 'scoped memory for tpu_custom_call.1']
    #allocation4 [shape = 'u8[98304]{0}', space=vmem, size = 0x18000, scoped, tag = 'output window, operand 1']
    #allocation5 [shape = 's32[2]{0}', space=sflag, size = 0x8, scoped, tag = 'scoped memory for tpu_custom_call.1']
    #allocation6 [shape = 'u8[655360]{0}', space=vmem, size = 0xa0000, scoped, tag = 'output window, operand 2']
    %10 = vsyncpa [#allocation3], 0
    %s11 = scalar_lea.sflag [#allocation3], 1
    %12 = vsyncpa %s11, 0
    %13 = vsyncpa [#allocation5], 0
    %s14 = scalar_lea.sflag [#allocation5], 1
    %15 = vsyncpa %s14, 0
    loop: start=0, step=1, limit=4
    $region2: #{tpu_custom_call.1} parent=1 // loop_pre_header
      _
    $region3: #{tpu_custom_call.1} parent=1 // loop_header
      %s17 = sphi 0, %s21
      %p18 = scmp.ge.s32.totalorder %s17, 4
      %s24 = sphi 0, %s36
      %s25 = sphi 0, %s32
      %s26 = sphi 0, %s24
      %s27 = sphi 0, %s25
      %s28 = sphi 0, %s26
      %s29 = sphi 0, %s27
      %s39 = sphi 0, %s41
      %s42 = sphi 0, %s39
      %s43 = sphi 0, %s42
      %s59 = sphi 0, %s43
      %s65 = sphi 0, %s67
      %s68 = sphi 0, %s65
      %s69 = sphi 0, %s68
      %s85 = sphi 0, %s69
      %s93 = sphi 0, %s95
      %s96 = sphi 0, %s93
      %s97 = sphi 0, %s96
      %s113 = sphi 0, %s97
      %s121 = sphi 0, %s123
      %s124 = sphi 0, %s121
      %s125 = sphi 0, %s124
      %s141 = sphi 0, %s125
      %s149 = sphi 0, %s151
      %s152 = sphi 0, %s149
      %s153 = sphi 0, %s152
      %s169 = sphi 0, %s153
    $region4: #{tpu_custom_call.1} parent=1 // loop_header_branch
      %20 = sbr.rel (%p18) target = $region8
    $region5: #{tpu_custom_call.1} parent=1 // loop_body
      %s22 = ssub.s32 %s17, 1
      %s23 = ssub.s32 %s17, 2
      %s30 = sadd.s32 1, %s25
      %p31 = scmp.ge.s32.totalorder %s30, 1
      %s32 = scalar_select %p31, 0, %s30
      %s33 = sadd.s32 1, %s24
      %s34 = scalar_select %p31, %s33, %s24
      %p35 = scmp.ge.s32.totalorder %s34, 2
      %s36 = scalar_select %p35, 0, %s34
      %s37 = ssub.s32 %s24, %s36
      %p38 = scmp.eq.s32.totalorder %s37, 0
      %s40 = sadd.s32 %s39, 1
      %s41 = scalar_select %p38, %s39, %s40
      %p44 = pneg %p38
      %p45 = scmp.eq.s32.totalorder %s17, 1
      %p46 = por %p44, %p45
      %p47 = scmp.ne.s32.totalorder %s39, %s42
      %p48 = scmp.eq.s32.totalorder %s17, 0
      %p49 = por %p47, %p48
      %p50 = scmp.ne.s32.totalorder %s39, %s42
      %p51 = scmp.eq.s32.totalorder %s22, 1
      %p52 = por %p50, %p51
      %p53 = scmp.ne.s32.totalorder %s42, %s43
      %p54 = scmp.eq.s32.totalorder %s22, 0
      %p55 = por %p53, %p54
      %p56 = scmp.ne.s32.totalorder %s42, %s43
      %p57 = scmp.eq.s32.totalorder %s23, 1
      %p58 = por %p56, %p57
      %p60 = scmp.ne.s32.totalorder %s43, %s59
      %p61 = scmp.eq.s32.totalorder %s23, 0
      %p62 = por %p60, %p61
      %s63 = ssub.s32 %s25, %s32
      %p64 = scmp.eq.s32.totalorder %s63, 0
      %s66 = sadd.s32 %s65, 1
      %s67 = scalar_select %p64, %s65, %s66
      %p70 = pneg %p64
      %p71 = scmp.eq.s32.totalorder %s17, 1
      %p72 = por %p70, %p71
      %p73 = scmp.ne.s32.totalorder %s65, %s68
      %p74 = scmp.eq.s32.totalorder %s17, 0
      %p75 = por %p73, %p74
      %p76 = scmp.ne.s32.totalorder %s65, %s68
      %p77 = scmp.eq.s32.totalorder %s22, 1
      %p78 = por %p76, %p77
      %p79 = scmp.ne.s32.totalorder %s68, %s69
      %p80 = scmp.eq.s32.totalorder %s22, 0
      %p81 = por %p79, %p80
      %p82 = scmp.ne.s32.totalorder %s68, %s69
      %p83 = scmp.eq.s32.totalorder %s23, 1
      %p84 = por %p82, %p83
      %p86 = scmp.ne.s32.totalorder %s69, %s85
      %p87 = scmp.eq.s32.totalorder %s23, 0
      %p88 = por %p86, %p87
      %s89 = ssub.s32 %s24, %s36
      %s90 = ssub.s32 %s25, %s32
      %s91 = sor.u32 %s89, %s90
      %p92 = scmp.eq.s32.totalorder %s91, 0
      %s94 = sadd.s32 %s93, 1
      %s95 = scalar_select %p92, %s93, %s94
      %p98 = pneg %p92
      %p99 = scmp.eq.s32.totalorder %s17, 1
      %p100 = por %p98, %p99
      %p101 = scmp.ne.s32.totalorder %s93, %s96
      %p102 = scmp.eq.s32.totalorder %s17, 0
      %p103 = por %p101, %p102
      %p104 = scmp.ne.s32.totalorder %s93, %s96
      %p105 = scmp.eq.s32.totalorder %s22, 1
      %p106 = por %p104, %p105
      %p107 = scmp.ne.s32.totalorder %s96, %s97
      %p108 = scmp.eq.s32.totalorder %s22, 0
      %p109 = por %p107, %p108
      %p110 = scmp.ne.s32.totalorder %s96, %s97
      %p111 = scmp.eq.s32.totalorder %s23, 1
      %p112 = por %p110, %p111
      %p114 = scmp.ne.s32.totalorder %s97, %s113
      %p115 = scmp.eq.s32.totalorder %s23, 0
      %p116 = por %p114, %p115
      %s117 = ssub.s32 %s24, %s36
      %s118 = ssub.s32 %s25, %s32
      %s119 = sor.u32 %s117, %s118
      %p120 = scmp.eq.s32.totalorder %s119, 0
      %s122 = sadd.s32 %s121, 1
      %s123 = scalar_select %p120, %s121, %s122
      %p126 = pneg %p120
      %p127 = scmp.eq.s32.totalorder %s17, 1
      %p128 = por %p126, %p127
      %p129 = scmp.ne.s32.totalorder %s121, %s124
      %p130 = scmp.eq.s32.totalorder %s17, 0
      %p131 = por %p129, %p130
      %p132 = scmp.ne.s32.totalorder %s121, %s124
      %p133 = scmp.eq.s32.totalorder %s22, 1
      %p134 = por %p132, %p133
      %p135 = scmp.ne.s32.totalorder %s124, %s125
      %p136 = scmp.eq.s32.totalorder %s22, 0
      %p137 = por %p135, %p136
      %p138 = scmp.ne.s32.totalorder %s124, %s125
      %p139 = scmp.eq.s32.totalorder %s23, 1
      %p140 = por %p138, %p139
      %p142 = scmp.ne.s32.totalorder %s125, %s141
      %p143 = scmp.eq.s32.totalorder %s23, 0
      %p144 = por %p142, %p143
      %s145 = ssub.s32 %s24, %s36
      %s146 = ssub.s32 %s25, %s32
      %s147 = sor.u32 %s145, %s146
      %p148 = scmp.eq.s32.totalorder %s147, 0
      %s150 = sadd.s32 %s149, 1
      %s151 = scalar_select %p148, %s149, %s150
      %p154 = pneg %p148
      %p155 = scmp.eq.s32.totalorder %s17, 1
      %p156 = por %p154, %p155
      %p157 = scmp.ne.s32.totalorder %s149, %s152
      %p158 = scmp.eq.s32.totalorder %s17, 0
      %p159 = por %p157, %p158
      %p160 = scmp.ne.s32.totalorder %s149, %s152
      %p161 = scmp.eq.s32.totalorder %s22, 1
      %p162 = por %p160, %p161
      %p163 = scmp.ne.s32.totalorder %s152, %s153
      %p164 = scmp.eq.s32.totalorder %s22, 0
      %p165 = por %p163, %p164
      %p166 = scmp.ne.s32.totalorder %s152, %s153
      %p167 = scmp.eq.s32.totalorder %s23, 1
      %p168 = por %p166, %p167
      %p170 = scmp.ne.s32.totalorder %s153, %s169
      %p171 = scmp.eq.s32.totalorder %s23, 0
      %p172 = por %p170, %p171
      %p173 = scmp.le.s32.totalorder 1, %s17
      %p174 = scmp.lt.s32.totalorder %s17, 3
      %p175 = pnand %p173, %p174
      %p176 = pneg %p175
      // Predicated region
      $region9: #{tpu_custom_call.1} parent=5 // pred_check
        _
      $region10: #{tpu_custom_call.1} parent=5 // pred_check_branch
        %178 = sbr.rel (%p175) target = $region12
      $region11: #{tpu_custom_call.1} parent=5 // pred_region
        %s179 = ssub.s32 %s17, 1
        // Predicated region
        $region13: #{tpu_custom_call.1} parent=11 // pred_check
          %p180 = pneg %p81
        $region14: #{tpu_custom_call.1} parent=11 // pred_check_branch
          %182 = sbr.rel (%p180) target = $region16
        $region15: #{tpu_custom_call.1} parent=11 // pred_region
          %p183 = scmp.lt.s32.totalorder %s27, 0
          %s184 = scalar_select %p183, %s27, 0
          %s185 = smul.addr %s184, 4
          %s186 = scalar_lea.vmem %s1, %s185
        $region16: #{tpu_custom_call.1} parent=11 // pred_fallthru
          _
      $region12: #{tpu_custom_call.1} parent=5 // pred_fallthru
        _
      %p187 = scmp.lt.s32.totalorder %s17, 2
      // Predicated region
      $region17: #{tpu_custom_call.1} parent=5 // pred_check
        %p188 = pneg %p187
      $region18: #{tpu_custom_call.1} parent=5 // pred_check_branch
        %190 = sbr.rel (%p188) target = $region20
      $region19: #{tpu_custom_call.1} parent=5 // pred_region
        // Predicated region
        $region21: #{tpu_custom_call.1} parent=19 // pred_check
          %p191 = pneg %p49
        $region22: #{tpu_custom_call.1} parent=19 // pred_check_branch
          %193 = sbr.rel (%p191) target = $region24
        $region23: #{tpu_custom_call.1} parent=19 // pred_region
          %s194 = smul.u32 4, %s24
          %p195 = scmp.lt.s32.totalorder %s194, 7
          %s196 = scalar_select %p195, %s194, 7
          %s197 = smul.addr %s196, 8
          %s198 = scalar_lea.vmem %s0, %s197
          %s199 = smul.u32 4, %s24
        $region24: #{tpu_custom_call.1} parent=19 // pred_fallthru
          _
      $region20: #{tpu_custom_call.1} parent=5 // pred_fallthru
        _
      %p200 = scmp.le.s32.totalorder 1, %s17
      %p201 = scmp.lt.s32.totalorder %s17, 3
      %p202 = pnand %p200, %p201
      %p203 = pneg %p202
      // Predicated region
      $region25: #{tpu_custom_call.1} parent=5 // pred_check
        _
      $region26: #{tpu_custom_call.1} parent=5 // pred_check_branch
        %205 = sbr.rel (%p202) target = $region28
      $region27: #{tpu_custom_call.1} parent=5 // pred_region
        %s206 = ssub.s32 %s17, 1
        %s207 = smul.u32 4, %s26
        %p208 = scmp.lt.s32.totalorder %s207, 7
        %s209 = scalar_select %p208, %s207, 7
        %s210 = smul.addr %s209, 8
        %s211 = scalar_lea.vmem %s0, %s210
        %p212 = pneg %p55
        %p213 = pneg %p52
        %p214 = scmp.lt.s32.totalorder %s27, 0
        %s215 = scalar_select %p214, %s27, 0
        %s216 = smul.addr %s215, 4
        %s217 = scalar_lea.vmem %s1, %s216
        %p218 = pneg %p81
        %p219 = pneg %p78
        %p220 = pneg %p109
        %p221 = pneg %p106
        %s222 = sand.u32 %s96, 1
        %s223 = scalar_lea.sflag [#allocation3], %s222
        %s224 = sand.u32 %s96, 1
        %s225 = smul.addr %s224, 32
        %s226 = scalar_lea.vmem [#allocation2], %s225
        %p227 = pneg %p137
        %p228 = pneg %p134
        %s229 = sand.u32 %s22, 1
        %s230 = scalar_lea.sflag [#allocation5], %s229
        %s231 = sand.u32 %s124, 1
        %s232 = smul.addr %s231, 96
        %s233 = scalar_lea.vmem [#allocation4], %s232
        %p234 = pneg %p165
        %p235 = pneg %p162
        %s236 = sand.u32 %s22, 1
        %s237 = scalar_lea.sflag [#allocation5], %s236
        %s238 = sand.u32 %s152, 1
        %s239 = smul.addr %s238, 640
        %s240 = scalar_lea.vmem [#allocation6], %s239
        %s241 = smul.u32 4, %s26
        %p242 = scmp.lt.s32.totalorder %s241, 7
        %s243 = scalar_select %p242, %s241, 7
        %s244 = smul.addr %s243, 8
        %s245 = scalar_lea.vmem %s0, %s244
        %s246 = smul.u32 4, %s26
        %p247 = scmp.lt.s32.totalorder %s27, 0
        %s248 = scalar_select %p247, %s27, 0
        %s249 = smul.addr %s248, 4
        %s250 = scalar_lea.vmem %s1, %s249
        %s251 = smul.u32 4, %s26
        %s252 = smul.u32 4, %s26
        %s253 = smul.u32 4, %s26
        %v254 = vld [vmem:[%s250] sm:$0x1]
        %v255 = vld [vmem:[%s250 + $0x1] sm:$0x1]
        %v256 = vld [vmem:[%s250 + $0x2] sm:$0x1]
        %v257 = vld [vmem:[%s245] sm:$0xff]
        %v258 = vld [vmem:[%s245 + $0x8] sm:$0xff]
        %260 = vset.pattern.permute.xlu0 0
        %261 = vperm.xlu0 %260, %v257
        %v262 = vpop.permute.xlu0 %261
        %265 = vset.pattern.permute.xlu0 0
        %266 = vperm.xlu0 %265, %v258
        %v267 = vpop.permute.xlu0 %266
        %v269 = vlaneseq
        %v270 = vshrl.u32 %v269, 7
        %v271 = vsub.s32 0, %v270
        %v272 = vrot.slane %v254, %v271
        %v273 = vsub.f32 %v262, %v272
        %v274 = vsub.f32 %v267, %v272
        %275 = vset.pattern.permute.xlu0 1
        %276 = vperm.xlu0 %275, %v257
        %v277 = vpop.permute.xlu0 %276
        %279 = vset.pattern.permute.xlu0 1
        %280 = vperm.xlu0 %279, %v258
        %v281 = vpop.permute.xlu0 %280
        %v283 = vlaneseq
        %v284 = vshrl.u32 %v283, 7
        %v285 = vsub.s32 0, %v284
        %v286 = vrot.slane %v255, %v285
        %v287 = vsub.f32 %v277, %v286
        %v288 = vsub.f32 %v281, %v286
        %289 = vset.pattern.permute.xlu0 2
        %290 = vperm.xlu0 %289, %v257
        %v291 = vpop.permute.xlu0 %290
        %293 = vset.pattern.permute.xlu0 2
        %294 = vperm.xlu0 %293, %v258
        %v295 = vpop.permute.xlu0 %294
        %v297 = vlaneseq
        %v298 = vshrl.u32 %v297, 7
        %v299 = vsub.s32 0, %v298
        %v300 = vrot.slane %v256, %v299
        %v301 = vsub.f32 %v291, %v300
        %v302 = vsub.f32 %v295, %v300
        %v303 = vmul.f32 %v273, %v273
        %v304 = vmul.f32 %v274, %v274
        %v305 = vmul.f32 %v287, %v287
        %v306 = vmul.f32 %v288, %v288
        %v307 = vadd.f32 %v303, %v305
        %v308 = vadd.f32 %v304, %v306
        %v309 = vmul.f32 %v301, %v301
        %v310 = vmul.f32 %v302, %v302
        %v311 = vadd.f32 %v307, %v309
        %v312 = vadd.f32 %v308, %v310
        %v313 = vrsqrt.pop %v311
        %v314 = vmul.f32 %v311, %v313
        %vm315 = vcmp.eq.f32.partialorder %v311, inf
        %v316 = vsel %vm315, %v311, %v314
        %vm317 = vcmp.eq.f32.partialorder %v311, 0.0
        %v318 = vand.u32 %v311, 2147483648
        %v319 = vsel %vm317, %v318, %v316
        %v320 = vrsqrt.pop %v312
        %v321 = vmul.f32 %v312, %v320
        %vm322 = vcmp.eq.f32.partialorder %v312, inf
        %v323 = vsel %vm322, %v312, %v321
        %vm324 = vcmp.eq.f32.partialorder %v312, 0.0
        %v325 = vand.u32 %v312, 2147483648
        %v326 = vsel %vm324, %v325, %v323
        %327 = vst [vmem:[%s226] sm:$0xff] %v319
        %328 = vst [vmem:[%s226 + $0x8] sm:$0xff] %v326
        %v329 = vadd.f32 %v319, 1e-11
        %v330 = vadd.f32 %v326, 1e-11
        %v331 = vrcp.pop %v329
        %v332 = vrcp.pop %v330
        %v333 = vmul.f32 %v329, %v331
        %v334 = vmul.f32 %v330, %v332
        %v335 = vsub.f32 2.0, %v333
        %v336 = vsub.f32 2.0, %v334
        %v337 = vmul.f32 %v331, %v335
        %v338 = vmul.f32 %v332, %v336
        %v339 = vmul.f32 %v273, %v337
        %v340 = vmul.f32 %v274, %v338
        %341 = vst [vmem:[%s233] sm:$0xff] %v339
        %342 = vst [vmem:[%s233 + $0x8] sm:$0xff] %v340
        %v343 = vmul.f32 %v287, %v337
        %v344 = vmul.f32 %v288, %v338
        %s345 = sadd.s32 0, 32
        %s346 = scalar_lea.vmem %s233, %s345 [#allocation4]
        %347 = vst [vmem:[%s346] sm:$0xff] %v343
        %348 = vst [vmem:[%s346 + $0x8] sm:$0xff] %v344
        %v349 = vmul.f32 %v301, %v337
        %v350 = vmul.f32 %v302, %v338
        %s351 = sadd.s32 0, 64
        %s352 = scalar_lea.vmem %s233, %s351 [#allocation4]
        %353 = vst [vmem:[%s352] sm:$0xff] %v349
        %354 = vst [vmem:[%s352 + $0x8] sm:$0xff] %v350
        %v355 = vmul.f32 %v319, 0.5291772
        %v356 = vmul.f32 %v326, 0.5291772
        %v357 = vadd.f32 %v355, 1e-11
        %v358 = vadd.f32 %v356, 1e-11
        %v359 = vrcp.pop %v357
        %v360 = vrcp.pop %v358
        %v361 = vmul.f32 %v357, %v359
        %v362 = vmul.f32 %v358, %v360
        %v363 = vsub.f32 2.0, %v361
        %v364 = vsub.f32 2.0, %v362
        %v365 = vmul.f32 %v359, %v363
        %v366 = vmul.f32 %v360, %v364
        %v367 = vmul.f32 %v357, 0.7853982
        %v368 = vmul.f32 %v358, 0.7853982
        %v369 = vand.u32 2147483647, %v367
        %vm370 = vcmp.le.f32.partialorder %v369, 0.7853982
        %vm371 = vcmp.lt.s32.totalorder %v367, 0
        %v372 = vand.u32 %v367, 2139095040
        %v373 = vshrl.u32 %v372, 23
        %v374 = vsub.s32 %v373, 127
        %v375 = vand.u32 2147483647, %v367
        %v376 = vand.u32 %v375, 8388607
        %v377 = vor.u32 %v376, 8388608
        %v378 = vsub.s32 0, %v377
        %v379 = vadd.s32 %v374, 1
        %vm380 = vcmp.gt.s32.totalorder %v379, 0
        %v381 = vsel %vm380, %v379, 0
        %v382 = vshrl.u32 %v381, 5
        %v383 = vand.u32 %v381, 31
        %v384 = vsub.s32 32, %v383
        %v385 = vshrl.u32 683565275, %v384
        %v386 = vshll.u32 683565275, %v383
        %v387 = vshrl.u32 2475754826, %v384
        %v388 = vor.u32 %v386, %v387
        %v389 = vshll.u32 2475754826, %v383
        %v390 = vshrl.u32 2131351028, %v384
        %v391 = vor.u32 %v389, %v390
        %v392 = vshll.u32 2131351028, %v383
        %v393 = vshrl.u32 2102212464, %v384
        %v394 = vor.u32 %v392, %v393
        %v395 = vshll.u32 2102212464, %v383
        %v396 = vshrl.u32 920167782, %v384
        %v397 = vor.u32 %v395, %v396
        %v398 = vshll.u32 920167782, %v383
        %v399 = vshrl.u32 1326507024, %v384
        %v400 = vor.u32 %v398, %v399
        %vm401 = vcmp.lt.s32.totalorder %v382, 1
        %vm402 = vcmp.lt.s32.totalorder %v382, 2
        %vm403 = vcmp.lt.s32.totalorder %v382, 3
        %vm404 = vcmp.lt.s32.totalorder %v382, 4
        %v405 = vsel %vm401, %v385, %v388
        %v406 = vsel %vm404, %v394, 2102212464
        %v407 = vsel %vm403, %v391, %v406
        %v408 = vsel %vm402, %v405, %v407
        %v409 = vsel %vm401, %v388, %v391
        %v410 = vsel %vm404, %v397, 920167782
        %v411 = vsel %vm403, %v394, %v410
        %v412 = vsel %vm402, %v409, %v411
        %v413 = vsel %vm401, %v391, %v394
        %v414 = vsel %vm404, %v400, 1326507024
        %v415 = vsel %vm403, %v397, %v414
        %v416 = vsel %vm402, %v413, %v415
        %v417 = vshll.u32 %v377, 8
        %v418 = vmul.u32.u64.compose %v417, %v416
        %v419 = vextract.low.u32 %v418
        %v420 = vextract.high.u32 %v418
        %v421 = vmul.u32.u64.compose %v417, %v412
        %v422 = vextract.low.u32 %v421
        %v423 = vextract.high.u32 %v421
        %v424 = vmul.u32 %v417, %v408
        %v425 = vadd.s32 %v420, %v422
        %vm426 = vc.u32 %v420, %v422
        %v427 = vadd.s32 %v423, 1
        %v428 = vsel %vm426, %v427, %v423
        %v429 = vadd.s32 %v424, %v428
        %v430 = vadd.s32 %v429, 536870912
        %v431 = vshrl.u32 %v430, 30
        %v432 = vshll.u32 %v431, 30
        %v433 = vsub.s32 %v429, %v432
        %vm434 = vcmp.lt.s32.totalorder %v433, 0
        %v435 = vsub.s32 0, %v433
        %v436 = vsel %vm434, %v435, %v433
        %v437 = vclz %v436
        %v438 = vsub.s32 %v437, 2
        %vm439 = vcmp.gt.s32.totalorder 0, %v438
        %v440 = vsel %vm439, 0, %v438
        %v441 = vsub.s32 32, %v440
        %v442 = vshll.u32 %v433, %v440
        %v443 = vshrl.u32 %v425, %v441
        %v444 = vor.u32 %v442, %v443
        %v445 = vsub.s32 4294967266, %v440
        %v446 = vadd.s32 %v445, 127
        %v447 = vshll.u32 %v446, 23
        %v448 = vor.u32 4788187, %v447
        %v449 = vand.u32 2147483647, %v448
        %v451 = vcvt.s32.f32 %v444
        %v452 = vmul.f32 %v451, %v449
        %v453 = vxor.u32 %v452, 2147483648
        %v454 = vsel %vm371, %v453, %v452
        %v455 = vsub.s32 4, %v431
        %v456 = vsel %vm371, %v455, %v431
        %v457 = vsel %vm370, %v367, %v454
        %v458 = vsel %vm370, 0, %v456
        %v459 = vcosq.f32.pop %v457
        %v460 = vsinq.f32.pop %v457
        %vm461 = vweird.f32 %v367
        %v462 = vadd.s32 %v458, 3
        %v463 = vand.u32 %v462, 3
        %vm464 = vcmp.lt.s32.totalorder %v463, 2
        %vm465 = vcmp.eq.s32.totalorder %v463, 0
        %v466 = vxor.u32 %v460, 2147483648
        %v467 = vsel %vm465, %v459, %v466
        %vm468 = vcmp.eq.s32.totalorder %v463, 2
        %v469 = vxor.u32 %v459, 2147483648
        %v470 = vsel %vm468, %v469, %v460
        %v471 = vsel %vm464, %v467, %v470
        %v472 = vsel %vm461, nan, %v471
        %v473 = vand.u32 2147483647, %v368
        %vm474 = vcmp.le.f32.partialorder %v473, 0.7853982
        %vm475 = vcmp.lt.s32.totalorder %v368, 0
        %v476 = vand.u32 %v368, 2139095040
        %v477 = vshrl.u32 %v476, 23
        %v478 = vsub.s32 %v477, 127
        %v479 = vand.u32 2147483647, %v368
        %v480 = vand.u32 %v479, 8388607
        %v481 = vor.u32 %v480, 8388608
        %v482 = vsub.s32 0, %v481
        %v483 = vadd.s32 %v478, 1
        %vm484 = vcmp.gt.s32.totalorder %v483, 0
        %v485 = vsel %vm484, %v483, 0
        %v486 = vshrl.u32 %v485, 5
        %v487 = vand.u32 %v485, 31
        %v488 = vsub.s32 32, %v487
        %v489 = vshrl.u32 683565275, %v488
        %v490 = vshll.u32 683565275, %v487
        %v491 = vshrl.u32 2475754826, %v488
        %v492 = vor.u32 %v490, %v491
        %v493 = vshll.u32 2475754826, %v487
        %v494 = vshrl.u32 2131351028, %v488
        %v495 = vor.u32 %v493, %v494
        %v496 = vshll.u32 2131351028, %v487
        %v497 = vshrl.u32 2102212464, %v488
        %v498 = vor.u32 %v496, %v497
        %v499 = vshll.u32 2102212464, %v487
        %v500 = vshrl.u32 920167782, %v488
        %v501 = vor.u32 %v499, %v500
        %v502 = vshll.u32 920167782, %v487
        %v503 = vshrl.u32 1326507024, %v488
        %v504 = vor.u32 %v502, %v503
        %vm505 = vcmp.lt.s32.totalorder %v486, 1
        %vm506 = vcmp.lt.s32.totalorder %v486, 2
        %vm507 = vcmp.lt.s32.totalorder %v486, 3
        %vm508 = vcmp.lt.s32.totalorder %v486, 4
        %v509 = vsel %vm505, %v489, %v492
        %v510 = vsel %vm508, %v498, 2102212464
        %v511 = vsel %vm507, %v495, %v510
        %v512 = vsel %vm506, %v509, %v511
        %v513 = vsel %vm505, %v492, %v495
        %v514 = vsel %vm508, %v501, 920167782
        %v515 = vsel %vm507, %v498, %v514
        %v516 = vsel %vm506, %v513, %v515
        %v517 = vsel %vm505, %v495, %v498
        %v518 = vsel %vm508, %v504, 1326507024
        %v519 = vsel %vm507, %v501, %v518
        %v520 = vsel %vm506, %v517, %v519
        %v521 = vshll.u32 %v481, 8
        %v522 = vmul.u32.u64.compose %v521, %v520
        %v523 = vextract.low.u32 %v522
        %v524 = vextract.high.u32 %v522
        %v525 = vmul.u32.u64.compose %v521, %v516
        %v526 = vextract.low.u32 %v525
        %v527 = vextract.high.u32 %v525
        %v528 = vmul.u32 %v521, %v512
        %v529 = vadd.s32 %v524, %v526
        %vm530 = vc.u32 %v524, %v526
        %v531 = vadd.s32 %v527, 1
        %v532 = vsel %vm530, %v531, %v527
        %v533 = vadd.s32 %v528, %v532
        %v534 = vadd.s32 %v533, 536870912
        %v535 = vshrl.u32 %v534, 30
        %v536 = vshll.u32 %v535, 30
        %v537 = vsub.s32 %v533, %v536
        %vm538 = vcmp.lt.s32.totalorder %v537, 0
        %v539 = vsub.s32 0, %v537
        %v540 = vsel %vm538, %v539, %v537
        %v541 = vclz %v540
        %v542 = vsub.s32 %v541, 2
        %vm543 = vcmp.gt.s32.totalorder 0, %v542
        %v544 = vsel %vm543, 0, %v542
        %v545 = vsub.s32 32, %v544
        %v546 = vshll.u32 %v537, %v544
        %v547 = vshrl.u32 %v529, %v545
        %v548 = vor.u32 %v546, %v547
        %v549 = vsub.s32 4294967266, %v544
        %v550 = vadd.s32 %v549, 127
        %v551 = vshll.u32 %v550, 23
        %v552 = vor.u32 4788187, %v551
        %v553 = vand.u32 2147483647, %v552
        %v555 = vcvt.s32.f32 %v548
        %v556 = vmul.f32 %v555, %v553
        %v557 = vxor.u32 %v556, 2147483648
        %v558 = vsel %vm475, %v557, %v556
        %v559 = vsub.s32 4, %v535
        %v560 = vsel %vm475, %v559, %v535
        %v561 = vsel %vm474, %v368, %v558
        %v562 = vsel %vm474, 0, %v560
        %v563 = vcosq.f32.pop %v561
        %v564 = vsinq.f32.pop %v561
        %vm565 = vweird.f32 %v368
        %v566 = vadd.s32 %v562, 3
        %v567 = vand.u32 %v566, 3
        %vm568 = vcmp.lt.s32.totalorder %v567, 2
        %vm569 = vcmp.eq.s32.totalorder %v567, 0
        %v570 = vxor.u32 %v564, 2147483648
        %v571 = vsel %vm569, %v563, %v570
        %vm572 = vcmp.eq.s32.totalorder %v567, 2
        %v573 = vxor.u32 %v563, 2147483648
        %v574 = vsel %vm572, %v573, %v564
        %v575 = vsel %vm568, %v571, %v574
        %v576 = vsel %vm565, nan, %v575
        %v577 = vand.u32 2147483647, %v367
        %vm578 = vcmp.le.f32.partialorder %v577, 0.7853982
        %vm579 = vcmp.lt.s32.totalorder %v367, 0
        %v580 = vand.u32 %v367, 2139095040
        %v581 = vshrl.u32 %v580, 23
        %v582 = vsub.s32 %v581, 127
        %v583 = vand.u32 2147483647, %v367
        %v584 = vand.u32 %v583, 8388607
        %v585 = vor.u32 %v584, 8388608
        %v586 = vsub.s32 0, %v585
        %v587 = vadd.s32 %v582, 1
        %vm588 = vcmp.gt.s32.totalorder %v587, 0
        %v589 = vsel %vm588, %v587, 0
        %v590 = vshrl.u32 %v589, 5
        %v591 = vand.u32 %v589, 31
        %v592 = vsub.s32 32, %v591
        %v593 = vshrl.u32 683565275, %v592
        %v594 = vshll.u32 683565275, %v591
        %v595 = vshrl.u32 2475754826, %v592
        %v596 = vor.u32 %v594, %v595
        %v597 = vshll.u32 2475754826, %v591
        %v598 = vshrl.u32 2131351028, %v592
        %v599 = vor.u32 %v597, %v598
        %v600 = vshll.u32 2131351028, %v591
        %v601 = vshrl.u32 2102212464, %v592
        %v602 = vor.u32 %v600, %v601
        %v603 = vshll.u32 2102212464, %v591
        %v604 = vshrl.u32 920167782, %v592
        %v605 = vor.u32 %v603, %v604
        %v606 = vshll.u32 920167782, %v591
        %v607 = vshrl.u32 1326507024, %v592
        %v608 = vor.u32 %v606, %v607
        %vm609 = vcmp.lt.s32.totalorder %v590, 1
        %vm610 = vcmp.lt.s32.totalorder %v590, 2
        %vm611 = vcmp.lt.s32.totalorder %v590, 3
        %vm612 = vcmp.lt.s32.totalorder %v590, 4
        %v613 = vsel %vm609, %v593, %v596
        %v614 = vsel %vm612, %v602, 2102212464
        %v615 = vsel %vm611, %v599, %v614
        %v616 = vsel %vm610, %v613, %v615
        %v617 = vsel %vm609, %v596, %v599
        %v618 = vsel %vm612, %v605, 920167782
        %v619 = vsel %vm611, %v602, %v618
        %v620 = vsel %vm610, %v617, %v619
        %v621 = vsel %vm609, %v599, %v602
        %v622 = vsel %vm612, %v608, 1326507024
        %v623 = vsel %vm611, %v605, %v622
        %v624 = vsel %vm610, %v621, %v623
        %v625 = vshll.u32 %v585, 8
        %v626 = vmul.u32.u64.compose %v625, %v624
        %v627 = vextract.low.u32 %v626
        %v628 = vextract.high.u32 %v626
        %v629 = vmul.u32.u64.compose %v625, %v620
        %v630 = vextract.low.u32 %v629
        %v631 = vextract.high.u32 %v629
        %v632 = vmul.u32 %v625, %v616
        %v633 = vadd.s32 %v628, %v630
        %vm634 = vc.u32 %v628, %v630
        %v635 = vadd.s32 %v631, 1
        %v636 = vsel %vm634, %v635, %v631
        %v637 = vadd.s32 %v632, %v636
        %v638 = vadd.s32 %v637, 536870912
        %v639 = vshrl.u32 %v638, 30
        %v640 = vshll.u32 %v639, 30
        %v641 = vsub.s32 %v637, %v640
        %vm642 = vcmp.lt.s32.totalorder %v641, 0
        %v643 = vsub.s32 0, %v641
        %v644 = vsel %vm642, %v643, %v641
        %v645 = vclz %v644
        %v646 = vsub.s32 %v645, 2
        %vm647 = vcmp.gt.s32.totalorder 0, %v646
        %v648 = vsel %vm647, 0, %v646
        %v649 = vsub.s32 32, %v648
        %v650 = vshll.u32 %v641, %v648
        %v651 = vshrl.u32 %v633, %v649
        %v652 = vor.u32 %v650, %v651
        %v653 = vsub.s32 4294967266, %v648
        %v654 = vadd.s32 %v653, 127
        %v655 = vshll.u32 %v654, 23
        %v656 = vor.u32 4788187, %v655
        %v657 = vand.u32 2147483647, %v656
        %v659 = vcvt.s32.f32 %v652
        %v660 = vmul.f32 %v659, %v657
        %v661 = vxor.u32 %v660, 2147483648
        %v662 = vsel %vm579, %v661, %v660
        %v663 = vsub.s32 4, %v639
        %v664 = vsel %vm579, %v663, %v639
        %v665 = vsel %vm578, %v367, %v662
        %v666 = vsel %vm578, 0, %v664
        %v667 = vcosq.f32.pop %v665
        %v668 = vsinq.f32.pop %v665
        %vm669 = vweird.f32 %v367
        %v670 = vand.u32 %v666, 3
        %vm671 = vcmp.lt.s32.totalorder %v670, 2
        %vm672 = vcmp.eq.s32.totalorder %v670, 0
        %v673 = vxor.u32 %v668, 2147483648
        %v674 = vsel %vm672, %v667, %v673
        %vm675 = vcmp.eq.s32.totalorder %v670, 2
        %v676 = vxor.u32 %v667, 2147483648
        %v677 = vsel %vm675, %v676, %v668
        %v678 = vsel %vm671, %v674, %v677
        %v679 = vsel %vm669, nan, %v678
        %v680 = vand.u32 2147483647, %v368
        %vm681 = vcmp.le.f32.partialorder %v680, 0.7853982
        %vm682 = vcmp.lt.s32.totalorder %v368, 0
        %v683 = vand.u32 %v368, 2139095040
        %v684 = vshrl.u32 %v683, 23
        %v685 = vsub.s32 %v684, 127
        %v686 = vand.u32 2147483647, %v368
        %v687 = vand.u32 %v686, 8388607
        %v688 = vor.u32 %v687, 8388608
        %v689 = vsub.s32 0, %v688
        %v690 = vadd.s32 %v685, 1
        %vm691 = vcmp.gt.s32.totalorder %v690, 0
        %v692 = vsel %vm691, %v690, 0
        %v693 = vshrl.u32 %v692, 5
        %v694 = vand.u32 %v692, 31
        %v695 = vsub.s32 32, %v694
        %v696 = vshrl.u32 683565275, %v695
        %v697 = vshll.u32 683565275, %v694
        %v698 = vshrl.u32 2475754826, %v695
        %v699 = vor.u32 %v697, %v698
        %v700 = vshll.u32 2475754826, %v694
        %v701 = vshrl.u32 2131351028, %v695
        %v702 = vor.u32 %v700, %v701
        %v703 = vshll.u32 2131351028, %v694
        %v704 = vshrl.u32 2102212464, %v695
        %v705 = vor.u32 %v703, %v704
        %v706 = vshll.u32 2102212464, %v694
        %v707 = vshrl.u32 920167782, %v695
        %v708 = vor.u32 %v706, %v707
        %v709 = vshll.u32 920167782, %v694
        %v710 = vshrl.u32 1326507024, %v695
        %v711 = vor.u32 %v709, %v710
        %vm712 = vcmp.lt.s32.totalorder %v693, 1
        %vm713 = vcmp.lt.s32.totalorder %v693, 2
        %vm714 = vcmp.lt.s32.totalorder %v693, 3
        %vm715 = vcmp.lt.s32.totalorder %v693, 4
        %v716 = vsel %vm712, %v696, %v699
        %v717 = vsel %vm715, %v705, 2102212464
        %v718 = vsel %vm714, %v702, %v717
        %v719 = vsel %vm713, %v716, %v718
        %v720 = vsel %vm712, %v699, %v702
        %v721 = vsel %vm715, %v708, 920167782
        %v722 = vsel %vm714, %v705, %v721
        %v723 = vsel %vm713, %v720, %v722
        %v724 = vsel %vm712, %v702, %v705
        %v725 = vsel %vm715, %v711, 1326507024
        %v726 = vsel %vm714, %v708, %v725
        %v727 = vsel %vm713, %v724, %v726
        %v728 = vshll.u32 %v688, 8
        %v729 = vmul.u32.u64.compose %v728, %v727
        %v730 = vextract.low.u32 %v729
        %v731 = vextract.high.u32 %v729
        %v732 = vmul.u32.u64.compose %v728, %v723
        %v733 = vextract.low.u32 %v732
        %v734 = vextract.high.u32 %v732
        %v735 = vmul.u32 %v728, %v719
        %v736 = vadd.s32 %v731, %v733
        %vm737 = vc.u32 %v731, %v733
        %v738 = vadd.s32 %v734, 1
        %v739 = vsel %vm737, %v738, %v734
        %v740 = vadd.s32 %v735, %v739
        %v741 = vadd.s32 %v740, 536870912
        %v742 = vshrl.u32 %v741, 30
        %v743 = vshll.u32 %v742, 30
        %v744 = vsub.s32 %v740, %v743
        %vm745 = vcmp.lt.s32.totalorder %v744, 0
        %v746 = vsub.s32 0, %v744
        %v747 = vsel %vm745, %v746, %v744
        %v748 = vclz %v747
        %v749 = vsub.s32 %v748, 2
        %vm750 = vcmp.gt.s32.totalorder 0, %v749
        %v751 = vsel %vm750, 0, %v749
        %v752 = vsub.s32 32, %v751
        %v753 = vshll.u32 %v744, %v751
        %v754 = vshrl.u32 %v736, %v752
        %v755 = vor.u32 %v753, %v754
        %v756 = vsub.s32 4294967266, %v751
        %v757 = vadd.s32 %v756, 127
        %v758 = vshll.u32 %v757, 23
        %v759 = vor.u32 4788187, %v758
        %v760 = vand.u32 2147483647, %v759
        %v762 = vcvt.s32.f32 %v755
        %v763 = vmul.f32 %v762, %v760
        %v764 = vxor.u32 %v763, 2147483648
        %v765 = vsel %vm682, %v764, %v763
        %v766 = vsub.s32 4, %v742
        %v767 = vsel %vm682, %v766, %v742
        %v768 = vsel %vm681, %v368, %v765
        %v769 = vsel %vm681, 0, %v767
        %v770 = vcosq.f32.pop %v768
        %v771 = vsinq.f32.pop %v768
        %vm772 = vweird.f32 %v368
        %v773 = vand.u32 %v769, 3
        %vm774 = vcmp.lt.s32.totalorder %v773, 2
        %vm775 = vcmp.eq.s32.totalorder %v773, 0
        %v776 = vxor.u32 %v771, 2147483648
        %v777 = vsel %vm775, %v770, %v776
        %vm778 = vcmp.eq.s32.totalorder %v773, 2
        %v779 = vxor.u32 %v770, 2147483648
        %v780 = vsel %vm778, %v779, %v771
        %v781 = vsel %vm774, %v777, %v780
        %v782 = vsel %vm772, nan, %v781
        %v783 = vmul.f32 %v679, 2.0
        %v784 = vmul.f32 %v782, 2.0
        %v785 = vmul.f32 %v472, %v365
        %v786 = vmul.f32 %v576, %v366
        %787 = vst [vmem:[%s240] sm:$0xff] %v785
        %788 = vst [vmem:[%s240 + $0x8] sm:$0xff] %v786
        %v789 = vmul.f32 %v783, %v472
        %v790 = vmul.f32 %v784, %v576
        %v791 = vmul.f32 %v789, %v365
        %v792 = vmul.f32 %v790, %v366
        %s793 = scalar_lea.vmem %s240, %s345 [#allocation6]
        %794 = vst [vmem:[%s793] sm:$0xff] %v791
        %795 = vst [vmem:[%s793 + $0x8] sm:$0xff] %v792
        %v796 = vmul.f32 %v783, %v789
        %v797 = vmul.f32 %v784, %v790
        %v798 = vsub.f32 %v796, %v472
        %v799 = vsub.f32 %v797, %v576
        %v800 = vmul.f32 %v798, %v365
        %v801 = vmul.f32 %v799, %v366
        %s802 = scalar_lea.vmem %s240, %s351 [#allocation6]
        %803 = vst [vmem:[%s802] sm:$0xff] %v800
        %804 = vst [vmem:[%s802 + $0x8] sm:$0xff] %v801
        %v805 = vmul.f32 %v783, %v798
        %v806 = vmul.f32 %v784, %v799
        %v807 = vsub.f32 %v805, %v789
        %v808 = vsub.f32 %v806, %v790
        %v809 = vmul.f32 %v807, %v365
        %v810 = vmul.f32 %v808, %v366
        %s811 = sadd.s32 0, 96
        %s812 = scalar_lea.vmem %s240, %s811 [#allocation6]
        %813 = vst [vmem:[%s812] sm:$0xff] %v809
        %814 = vst [vmem:[%s812 + $0x8] sm:$0xff] %v810
        %v815 = vmul.f32 %v783, %v807
        %v816 = vmul.f32 %v784, %v808
        %v817 = vsub.f32 %v815, %v798
        %v818 = vsub.f32 %v816, %v799
        %v819 = vmul.f32 %v817, %v365
        %v820 = vmul.f32 %v818, %v366
        %s821 = sadd.s32 0, 128
        %s822 = scalar_lea.vmem %s240, %s821 [#allocation6]
        %823 = vst [vmem:[%s822] sm:$0xff] %v819
        %824 = vst [vmem:[%s822 + $0x8] sm:$0xff] %v820
        %v825 = vmul.f32 %v783, %v817
        %v826 = vmul.f32 %v784, %v818
        %v827 = vsub.f32 %v825, %v807
        %v828 = vsub.f32 %v826, %v808
        %v829 = vmul.f32 %v827, %v365
        %v830 = vmul.f32 %v828, %v366
        %s831 = sadd.s32 0, 160
        %s832 = scalar_lea.vmem %s240, %s831 [#allocation6]
        %833 = vst [vmem:[%s832] sm:$0xff] %v829
        %834 = vst [vmem:[%s832 + $0x8] sm:$0xff] %v830
        %v835 = vmul.f32 %v783, %v827
        %v836 = vmul.f32 %v784, %v828
        %v837 = vsub.f32 %v835, %v817
        %v838 = vsub.f32 %v836, %v818
        %v839 = vmul.f32 %v837, %v365
        %v840 = vmul.f32 %v838, %v366
        %s841 = sadd.s32 0, 192
        %s842 = scalar_lea.vmem %s240, %s841 [#allocation6]
        %843 = vst [vmem:[%s842] sm:$0xff] %v839
        %844 = vst [vmem:[%s842 + $0x8] sm:$0xff] %v840
        %v845 = vmul.f32 %v783, %v837
        %v846 = vmul.f32 %v784, %v838
        %v847 = vsub.f32 %v845, %v827
        %v848 = vsub.f32 %v846, %v828
        %v849 = vmul.f32 %v847, %v365
        %v850 = vmul.f32 %v848, %v366
        %s851 = sadd.s32 0, 224
        %s852 = scalar_lea.vmem %s240, %s851 [#allocation6]
        %853 = vst [vmem:[%s852] sm:$0xff] %v849
        %854 = vst [vmem:[%s852 + $0x8] sm:$0xff] %v850
        %v855 = vmul.f32 %v783, %v847
        %v856 = vmul.f32 %v784, %v848
        %v857 = vsub.f32 %v855, %v837
        %v858 = vsub.f32 %v856, %v838
        %v859 = vmul.f32 %v857, %v365
        %v860 = vmul.f32 %v858, %v366
        %s861 = sadd.s32 0, 256
        %s862 = scalar_lea.vmem %s240, %s861 [#allocation6]
        %863 = vst [vmem:[%s862] sm:$0xff] %v859
        %864 = vst [vmem:[%s862 + $0x8] sm:$0xff] %v860
        %v865 = vmul.f32 %v783, %v857
        %v866 = vmul.f32 %v784, %v858
        %v867 = vsub.f32 %v865, %v847
        %v868 = vsub.f32 %v866, %v848
        %v869 = vmul.f32 %v867, %v365
        %v870 = vmul.f32 %v868, %v366
        %s871 = sadd.s32 0, 288
        %s872 = scalar_lea.vmem %s240, %s871 [#allocation6]
        %873 = vst [vmem:[%s872] sm:$0xff] %v869
        %874 = vst [vmem:[%s872 + $0x8] sm:$0xff] %v870
        %v875 = vmul.f32 %v783, %v867
        %v876 = vmul.f32 %v784, %v868
        %v877 = vsub.f32 %v875, %v857
        %v878 = vsub.f32 %v876, %v858
        %v879 = vmul.f32 %v877, %v365
        %v880 = vmul.f32 %v878, %v366
        %s881 = sadd.s32 0, 320
        %s882 = scalar_lea.vmem %s240, %s881 [#allocation6]
        %883 = vst [vmem:[%s882] sm:$0xff] %v879
        %884 = vst [vmem:[%s882 + $0x8] sm:$0xff] %v880
        %v885 = vmul.f32 %v783, %v877
        %v886 = vmul.f32 %v784, %v878
        %v887 = vsub.f32 %v885, %v867
        %v888 = vsub.f32 %v886, %v868
        %v889 = vmul.f32 %v887, %v365
        %v890 = vmul.f32 %v888, %v366
        %s891 = sadd.s32 0, 352
        %s892 = scalar_lea.vmem %s240, %s891 [#allocation6]
        %893 = vst [vmem:[%s892] sm:$0xff] %v889
        %894 = vst [vmem:[%s892 + $0x8] sm:$0xff] %v890
        %v895 = vmul.f32 %v783, %v887
        %v896 = vmul.f32 %v784, %v888
        %v897 = vsub.f32 %v895, %v877
        %v898 = vsub.f32 %v896, %v878
        %v899 = vmul.f32 %v897, %v365
        %v900 = vmul.f32 %v898, %v366
        %s901 = sadd.s32 0, 384
        %s902 = scalar_lea.vmem %s240, %s901 [#allocation6]
        %903 = vst [vmem:[%s902] sm:$0xff] %v899
        %904 = vst [vmem:[%s902 + $0x8] sm:$0xff] %v900
        %v905 = vmul.f32 %v783, %v897
        %v906 = vmul.f32 %v784, %v898
        %v907 = vsub.f32 %v905, %v887
        %v908 = vsub.f32 %v906, %v888
        %v909 = vmul.f32 %v907, %v365
        %v910 = vmul.f32 %v908, %v366
        %s911 = sadd.s32 0, 416
        %s912 = scalar_lea.vmem %s240, %s911 [#allocation6]
        %913 = vst [vmem:[%s912] sm:$0xff] %v909
        %914 = vst [vmem:[%s912 + $0x8] sm:$0xff] %v910
        %v915 = vmul.f32 %v783, %v907
        %v916 = vmul.f32 %v784, %v908
        %v917 = vsub.f32 %v915, %v897
        %v918 = vsub.f32 %v916, %v898
        %v919 = vmul.f32 %v917, %v365
        %v920 = vmul.f32 %v918, %v366
        %s921 = sadd.s32 0, 448
        %s922 = scalar_lea.vmem %s240, %s921 [#allocation6]
        %923 = vst [vmem:[%s922] sm:$0xff] %v919
        %924 = vst [vmem:[%s922 + $0x8] sm:$0xff] %v920
        %v925 = vmul.f32 %v783, %v917
        %v926 = vmul.f32 %v784, %v918
        %v927 = vsub.f32 %v925, %v907
        %v928 = vsub.f32 %v926, %v908
        %v929 = vmul.f32 %v927, %v365
        %v930 = vmul.f32 %v928, %v366
        %s931 = sadd.s32 0, 480
        %s932 = scalar_lea.vmem %s240, %s931 [#allocation6]
        %933 = vst [vmem:[%s932] sm:$0xff] %v929
        %934 = vst [vmem:[%s932 + $0x8] sm:$0xff] %v930
        %v935 = vmul.f32 %v783, %v927
        %v936 = vmul.f32 %v784, %v928
        %v937 = vsub.f32 %v935, %v917
        %v938 = vsub.f32 %v936, %v918
        %v939 = vmul.f32 %v937, %v365
        %v940 = vmul.f32 %v938, %v366
        %s941 = sadd.s32 0, 512
        %s942 = scalar_lea.vmem %s240, %s941 [#allocation6]
        %943 = vst [vmem:[%s942] sm:$0xff] %v939
        %944 = vst [vmem:[%s942 + $0x8] sm:$0xff] %v940
        %v945 = vmul.f32 %v783, %v937
        %v946 = vmul.f32 %v784, %v938
        %v947 = vsub.f32 %v945, %v927
        %v948 = vsub.f32 %v946, %v928
        %v949 = vmul.f32 %v947, %v365
        %v950 = vmul.f32 %v948, %v366
        %s951 = sadd.s32 0, 544
        %s952 = scalar_lea.vmem %s240, %s951 [#allocation6]
        %953 = vst [vmem:[%s952] sm:$0xff] %v949
        %954 = vst [vmem:[%s952 + $0x8] sm:$0xff] %v950
        %v955 = vmul.f32 %v783, %v947
        %v956 = vmul.f32 %v784, %v948
        %v957 = vsub.f32 %v955, %v937
        %v958 = vsub.f32 %v956, %v938
        %v959 = vmul.f32 %v957, %v365
        %v960 = vmul.f32 %v958, %v366
        %s961 = sadd.s32 0, 576
        %s962 = scalar_lea.vmem %s240, %s961 [#allocation6]
        %963 = vst [vmem:[%s962] sm:$0xff] %v959
        %964 = vst [vmem:[%s962 + $0x8] sm:$0xff] %v960
        %v965 = vmul.f32 %v783, %v957
        %v966 = vmul.f32 %v784, %v958
        %v967 = vsub.f32 %v965, %v947
        %v968 = vsub.f32 %v966, %v948
        %v969 = vmul.f32 %v967, %v365
        %v970 = vmul.f32 %v968, %v366
        %s971 = sadd.s32 0, 608
        %s972 = scalar_lea.vmem %s240, %s971 [#allocation6]
        %973 = vst [vmem:[%s972] sm:$0xff] %v969
        %974 = vst [vmem:[%s972 + $0x8] sm:$0xff] %v970
        %s975 = scalar_lea.vmem %s245, 16
        %v976 = vld [vmem:[%s975] sm:$0xff]
        %v977 = vld [vmem:[%s975 + $0x8] sm:$0xff]
        %979 = vset.pattern.permute.xlu0 0
        %980 = vperm.xlu0 %979, %v976
        %v981 = vpop.permute.xlu0 %980
        %984 = vset.pattern.permute.xlu0 0
        %985 = vperm.xlu0 %984, %v977
        %v986 = vpop.permute.xlu0 %985
        %v988 = vsub.f32 %v981, %v272
        %v989 = vsub.f32 %v986, %v272
        %990 = vset.pattern.permute.xlu0 1
        %991 = vperm.xlu0 %990, %v976
        %v992 = vpop.permute.xlu0 %991
        %994 = vset.pattern.permute.xlu0 1
        %995 = vperm.xlu0 %994, %v977
        %v996 = vpop.permute.xlu0 %995
        %v998 = vsub.f32 %v992, %v286
        %v999 = vsub.f32 %v996, %v286
        %1000 = vset.pattern.permute.xlu0 2
        %1001 = vperm.xlu0 %1000, %v976
        %v1002 = vpop.permute.xlu0 %1001
        %1004 = vset.pattern.permute.xlu0 2
        %1005 = vperm.xlu0 %1004, %v977
        %v1006 = vpop.permute.xlu0 %1005
        %v1008 = vsub.f32 %v1002, %v300
        %v1009 = vsub.f32 %v1006, %v300
        %v1010 = vmul.f32 %v988, %v988
        %v1011 = vmul.f32 %v989, %v989
        %v1012 = vmul.f32 %v998, %v998
        %v1013 = vmul.f32 %v999, %v999
        %v1014 = vadd.f32 %v1010, %v1012
        %v1015 = vadd.f32 %v1011, %v1013
        %v1016 = vmul.f32 %v1008, %v1008
        %v1017 = vmul.f32 %v1009, %v1009
        %v1018 = vadd.f32 %v1014, %v1016
        %v1019 = vadd.f32 %v1015, %v1017
        %v1020 = vrsqrt.pop %v1018
        %v1021 = vmul.f32 %v1018, %v1020
        %vm1022 = vcmp.eq.f32.partialorder %v1018, inf
        %v1023 = vsel %vm1022, %v1018, %v1021
        %vm1024 = vcmp.eq.f32.partialorder %v1018, 0.0
        %v1025 = vand.u32 %v1018, 2147483648
        %v1026 = vsel %vm1024, %v1025, %v1023
        %v1027 = vrsqrt.pop %v1019
        %v1028 = vmul.f32 %v1019, %v1027
        %vm1029 = vcmp.eq.f32.partialorder %v1019, inf
        %v1030 = vsel %vm1029, %v1019, %v1028
        %vm1031 = vcmp.eq.f32.partialorder %v1019, 0.0
        %v1032 = vand.u32 %v1019, 2147483648
        %v1033 = vsel %vm1031, %v1032, %v1030
        %s1034 = scalar_lea.vmem %s226, 16 [#allocation2]
        %1035 = vst [vmem:[%s1034] sm:$0xff] %v1026
        %1036 = vst [vmem:[%s1034 + $0x8] sm:$0xff] %v1033
        %v1037 = vadd.f32 %v1026, 1e-11
        %v1038 = vadd.f32 %v1033, 1e-11
        %v1039 = vrcp.pop %v1037
        %v1040 = vrcp.pop %v1038
        %v1041 = vmul.f32 %v1037, %v1039
        %v1042 = vmul.f32 %v1038, %v1040
        %v1043 = vsub.f32 2.0, %v1041
        %v1044 = vsub.f32 2.0, %v1042
        %v1045 = vmul.f32 %v1039, %v1043
        %v1046 = vmul.f32 %v1040, %v1044
        %v1047 = vmul.f32 %v988, %v1045
        %v1048 = vmul.f32 %v989, %v1046
        %s1049 = scalar_lea.vmem %s233, 16 [#allocation4]
        %1050 = vst [vmem:[%s1049] sm:$0xff] %v1047
        %1051 = vst [vmem:[%s1049 + $0x8] sm:$0xff] %v1048
        %v1052 = vmul.f32 %v998, %v1045
        %v1053 = vmul.f32 %v999, %v1046
        %s1054 = sadd.s32 16, 32
        %s1055 = scalar_lea.vmem %s233, %s1054 [#allocation4]
        %1056 = vst [vmem:[%s1055] sm:$0xff] %v1052
        %1057 = vst [vmem:[%s1055 + $0x8] sm:$0xff] %v1053
        %v1058 = vmul.f32 %v1008, %v1045
        %v1059 = vmul.f32 %v1009, %v1046
        %s1060 = sadd.s32 16, 64
        %s1061 = scalar_lea.vmem %s233, %s1060 [#allocation4]
        %1062 = vst [vmem:[%s1061] sm:$0xff] %v1058
        %1063 = vst [vmem:[%s1061 + $0x8] sm:$0xff] %v1059
        %v1064 = vmul.f32 %v1026, 0.5291772
        %v1065 = vmul.f32 %v1033, 0.5291772
        %v1066 = vadd.f32 %v1064, 1e-11
        %v1067 = vadd.f32 %v1065, 1e-11
        %v1068 = vrcp.pop %v1066
        %v1069 = vrcp.pop %v1067
        %v1070 = vmul.f32 %v1066, %v1068
        %v1071 = vmul.f32 %v1067, %v1069
        %v1072 = vsub.f32 2.0, %v1070
        %v1073 = vsub.f32 2.0, %v1071
        %v1074 = vmul.f32 %v1068, %v1072
        %v1075 = vmul.f32 %v1069, %v1073
        %v1076 = vmul.f32 %v1066, 0.7853982
        %v1077 = vmul.f32 %v1067, 0.7853982
        %v1078 = vand.u32 2147483647, %v1076
        %vm1079 = vcmp.le.f32.partialorder %v1078, 0.7853982
        %vm1080 = vcmp.lt.s32.totalorder %v1076, 0
        %v1081 = vand.u32 %v1076, 2139095040
        %v1082 = vshrl.u32 %v1081, 23
        %v1083 = vsub.s32 %v1082, 127
        %v1084 = vand.u32 2147483647, %v1076
        %v1085 = vand.u32 %v1084, 8388607
        %v1086 = vor.u32 %v1085, 8388608
        %v1087 = vsub.s32 0, %v1086
        %v1088 = vadd.s32 %v1083, 1
        %vm1089 = vcmp.gt.s32.totalorder %v1088, 0
        %v1090 = vsel %vm1089, %v1088, 0
        %v1091 = vshrl.u32 %v1090, 5
        %v1092 = vand.u32 %v1090, 31
        %v1093 = vsub.s32 32, %v1092
        %v1094 = vshrl.u32 683565275, %v1093
        %v1095 = vshll.u32 683565275, %v1092
        %v1096 = vshrl.u32 2475754826, %v1093
        %v1097 = vor.u32 %v1095, %v1096
        %v1098 = vshll.u32 2475754826, %v1092
        %v1099 = vshrl.u32 2131351028, %v1093
        %v1100 = vor.u32 %v1098, %v1099
        %v1101 = vshll.u32 2131351028, %v1092
        %v1102 = vshrl.u32 2102212464, %v1093
        %v1103 = vor.u32 %v1101, %v1102
        %v1104 = vshll.u32 2102212464, %v1092
        %v1105 = vshrl.u32 920167782, %v1093
        %v1106 = vor.u32 %v1104, %v1105
        %v1107 = vshll.u32 920167782, %v1092
        %v1108 = vshrl.u32 1326507024, %v1093
        %v1109 = vor.u32 %v1107, %v1108
        %vm1110 = vcmp.lt.s32.totalorder %v1091, 1
        %vm1111 = vcmp.lt.s32.totalorder %v1091, 2
        %vm1112 = vcmp.lt.s32.totalorder %v1091, 3
        %vm1113 = vcmp.lt.s32.totalorder %v1091, 4
        %v1114 = vsel %vm1110, %v1094, %v1097
        %v1115 = vsel %vm1113, %v1103, 2102212464
        %v1116 = vsel %vm1112, %v1100, %v1115
        %v1117 = vsel %vm1111, %v1114, %v1116
        %v1118 = vsel %vm1110, %v1097, %v1100
        %v1119 = vsel %vm1113, %v1106, 920167782
        %v1120 = vsel %vm1112, %v1103, %v1119
        %v1121 = vsel %vm1111, %v1118, %v1120
        %v1122 = vsel %vm1110, %v1100, %v1103
        %v1123 = vsel %vm1113, %v1109, 1326507024
        %v1124 = vsel %vm1112, %v1106, %v1123
        %v1125 = vsel %vm1111, %v1122, %v1124
        %v1126 = vshll.u32 %v1086, 8
        %v1127 = vmul.u32.u64.compose %v1126, %v1125
        %v1128 = vextract.low.u32 %v1127
        %v1129 = vextract.high.u32 %v1127
        %v1130 = vmul.u32.u64.compose %v1126, %v1121
        %v1131 = vextract.low.u32 %v1130
        %v1132 = vextract.high.u32 %v1130
        %v1133 = vmul.u32 %v1126, %v1117
        %v1134 = vadd.s32 %v1129, %v1131
        %vm1135 = vc.u32 %v1129, %v1131
        %v1136 = vadd.s32 %v1132, 1
        %v1137 = vsel %vm1135, %v1136, %v1132
        %v1138 = vadd.s32 %v1133, %v1137
        %v1139 = vadd.s32 %v1138, 536870912
        %v1140 = vshrl.u32 %v1139, 30
        %v1141 = vshll.u32 %v1140, 30
        %v1142 = vsub.s32 %v1138, %v1141
        %vm1143 = vcmp.lt.s32.totalorder %v1142, 0
        %v1144 = vsub.s32 0, %v1142
        %v1145 = vsel %vm1143, %v1144, %v1142
        %v1146 = vclz %v1145
        %v1147 = vsub.s32 %v1146, 2
        %vm1148 = vcmp.gt.s32.totalorder 0, %v1147
        %v1149 = vsel %vm1148, 0, %v1147
        %v1150 = vsub.s32 32, %v1149
        %v1151 = vshll.u32 %v1142, %v1149
        %v1152 = vshrl.u32 %v1134, %v1150
        %v1153 = vor.u32 %v1151, %v1152
        %v1154 = vsub.s32 4294967266, %v1149
        %v1155 = vadd.s32 %v1154, 127
        %v1156 = vshll.u32 %v1155, 23
        %v1157 = vor.u32 4788187, %v1156
        %v1158 = vand.u32 2147483647, %v1157
        %v1160 = vcvt.s32.f32 %v1153
        %v1161 = vmul.f32 %v1160, %v1158
        %v1162 = vxor.u32 %v1161, 2147483648
        %v1163 = vsel %vm1080, %v1162, %v1161
        %v1164 = vsub.s32 4, %v1140
        %v1165 = vsel %vm1080, %v1164, %v1140
        %v1166 = vsel %vm1079, %v1076, %v1163
        %v1167 = vsel %vm1079, 0, %v1165
        %v1168 = vcosq.f32.pop %v1166
        %v1169 = vsinq.f32.pop %v1166
        %vm1170 = vweird.f32 %v1076
        %v1171 = vadd.s32 %v1167, 3
        %v1172 = vand.u32 %v1171, 3
        %vm1173 = vcmp.lt.s32.totalorder %v1172, 2
        %vm1174 = vcmp.eq.s32.totalorder %v1172, 0
        %v1175 = vxor.u32 %v1169, 2147483648
        %v1176 = vsel %vm1174, %v1168, %v1175
        %vm1177 = vcmp.eq.s32.totalorder %v1172, 2
        %v1178 = vxor.u32 %v1168, 2147483648
        %v1179 = vsel %vm1177, %v1178, %v1169
        %v1180 = vsel %vm1173, %v1176, %v1179
        %v1181 = vsel %vm1170, nan, %v1180
        %v1182 = vand.u32 2147483647, %v1077
        %vm1183 = vcmp.le.f32.partialorder %v1182, 0.7853982
        %vm1184 = vcmp.lt.s32.totalorder %v1077, 0
        %v1185 = vand.u32 %v1077, 2139095040
        %v1186 = vshrl.u32 %v1185, 23
        %v1187 = vsub.s32 %v1186, 127
        %v1188 = vand.u32 2147483647, %v1077
        %v1189 = vand.u32 %v1188, 8388607
        %v1190 = vor.u32 %v1189, 8388608
        %v1191 = vsub.s32 0, %v1190
        %v1192 = vadd.s32 %v1187, 1
        %vm1193 = vcmp.gt.s32.totalorder %v1192, 0
        %v1194 = vsel %vm1193, %v1192, 0
        %v1195 = vshrl.u32 %v1194, 5
        %v1196 = vand.u32 %v1194, 31
        %v1197 = vsub.s32 32, %v1196
        %v1198 = vshrl.u32 683565275, %v1197
        %v1199 = vshll.u32 683565275, %v1196
        %v1200 = vshrl.u32 2475754826, %v1197
        %v1201 = vor.u32 %v1199, %v1200
        %v1202 = vshll.u32 2475754826, %v1196
        %v1203 = vshrl.u32 2131351028, %v1197
        %v1204 = vor.u32 %v1202, %v1203
        %v1205 = vshll.u32 2131351028, %v1196
        %v1206 = vshrl.u32 2102212464, %v1197
        %v1207 = vor.u32 %v1205, %v1206
        %v1208 = vshll.u32 2102212464, %v1196
        %v1209 = vshrl.u32 920167782, %v1197
        %v1210 = vor.u32 %v1208, %v1209
        %v1211 = vshll.u32 920167782, %v1196
        %v1212 = vshrl.u32 1326507024, %v1197
        %v1213 = vor.u32 %v1211, %v1212
        %vm1214 = vcmp.lt.s32.totalorder %v1195, 1
        %vm1215 = vcmp.lt.s32.totalorder %v1195, 2
        %vm1216 = vcmp.lt.s32.totalorder %v1195, 3
        %vm1217 = vcmp.lt.s32.totalorder %v1195, 4
        %v1218 = vsel %vm1214, %v1198, %v1201
        %v1219 = vsel %vm1217, %v1207, 2102212464
        %v1220 = vsel %vm1216, %v1204, %v1219
        %v1221 = vsel %vm1215, %v1218, %v1220
        %v1222 = vsel %vm1214, %v1201, %v1204
        %v1223 = vsel %vm1217, %v1210, 920167782
        %v1224 = vsel %vm1216, %v1207, %v1223
        %v1225 = vsel %vm1215, %v1222, %v1224
        %v1226 = vsel %vm1214, %v1204, %v1207
        %v1227 = vsel %vm1217, %v1213, 1326507024
        %v1228 = vsel %vm1216, %v1210, %v1227
        %v1229 = vsel %vm1215, %v1226, %v1228
        %v1230 = vshll.u32 %v1190, 8
        %v1231 = vmul.u32.u64.compose %v1230, %v1229
        %v1232 = vextract.low.u32 %v1231
        %v1233 = vextract.high.u32 %v1231
        %v1234 = vmul.u32.u64.compose %v1230, %v1225
        %v1235 = vextract.low.u32 %v1234
        %v1236 = vextract.high.u32 %v1234
        %v1237 = vmul.u32 %v1230, %v1221
        %v1238 = vadd.s32 %v1233, %v1235
        %vm1239 = vc.u32 %v1233, %v1235
        %v1240 = vadd.s32 %v1236, 1
        %v1241 = vsel %vm1239, %v1240, %v1236
        %v1242 = vadd.s32 %v1237, %v1241
        %v1243 = vadd.s32 %v1242, 536870912
        %v1244 = vshrl.u32 %v1243, 30
        %v1245 = vshll.u32 %v1244, 30
        %v1246 = vsub.s32 %v1242, %v1245
        %vm1247 = vcmp.lt.s32.totalorder %v1246, 0
        %v1248 = vsub.s32 0, %v1246
        %v1249 = vsel %vm1247, %v1248, %v1246
        %v1250 = vclz %v1249
        %v1251 = vsub.s32 %v1250, 2
        %vm1252 = vcmp.gt.s32.totalorder 0, %v1251
        %v1253 = vsel %vm1252, 0, %v1251
        %v1254 = vsub.s32 32, %v1253
        %v1255 = vshll.u32 %v1246, %v1253
        %v1256 = vshrl.u32 %v1238, %v1254
        %v1257 = vor.u32 %v1255, %v1256
        %v1258 = vsub.s32 4294967266, %v1253
        %v1259 = vadd.s32 %v1258, 127
        %v1260 = vshll.u32 %v1259, 23
        %v1261 = vor.u32 4788187, %v1260
        %v1262 = vand.u32 2147483647, %v1261
        %v1264 = vcvt.s32.f32 %v1257
        %v1265 = vmul.f32 %v1264, %v1262
        %v1266 = vxor.u32 %v1265, 2147483648
        %v1267 = vsel %vm1184, %v1266, %v1265
        %v1268 = vsub.s32 4, %v1244
        %v1269 = vsel %vm1184, %v1268, %v1244
        %v1270 = vsel %vm1183, %v1077, %v1267
        %v1271 = vsel %vm1183, 0, %v1269
        %v1272 = vcosq.f32.pop %v1270
        %v1273 = vsinq.f32.pop %v1270
        %vm1274 = vweird.f32 %v1077
        %v1275 = vadd.s32 %v1271, 3
        %v1276 = vand.u32 %v1275, 3
        %vm1277 = vcmp.lt.s32.totalorder %v1276, 2
        %vm1278 = vcmp.eq.s32.totalorder %v1276, 0
        %v1279 = vxor.u32 %v1273, 2147483648
        %v1280 = vsel %vm1278, %v1272, %v1279
        %vm1281 = vcmp.eq.s32.totalorder %v1276, 2
        %v1282 = vxor.u32 %v1272, 2147483648
        %v1283 = vsel %vm1281, %v1282, %v1273
        %v1284 = vsel %vm1277, %v1280, %v1283
        %v1285 = vsel %vm1274, nan, %v1284
        %v1286 = vand.u32 2147483647, %v1076
        %vm1287 = vcmp.le.f32.partialorder %v1286, 0.7853982
        %vm1288 = vcmp.lt.s32.totalorder %v1076, 0
        %v1289 = vand.u32 %v1076, 2139095040
        %v1290 = vshrl.u32 %v1289, 23
        %v1291 = vsub.s32 %v1290, 127
        %v1292 = vand.u32 2147483647, %v1076
        %v1293 = vand.u32 %v1292, 8388607
        %v1294 = vor.u32 %v1293, 8388608
        %v1295 = vsub.s32 0, %v1294
        %v1296 = vadd.s32 %v1291, 1
        %vm1297 = vcmp.gt.s32.totalorder %v1296, 0
        %v1298 = vsel %vm1297, %v1296, 0
        %v1299 = vshrl.u32 %v1298, 5
        %v1300 = vand.u32 %v1298, 31
        %v1301 = vsub.s32 32, %v1300
        %v1302 = vshrl.u32 683565275, %v1301
        %v1303 = vshll.u32 683565275, %v1300
        %v1304 = vshrl.u32 2475754826, %v1301
        %v1305 = vor.u32 %v1303, %v1304
        %v1306 = vshll.u32 2475754826, %v1300
        %v1307 = vshrl.u32 2131351028, %v1301
        %v1308 = vor.u32 %v1306, %v1307
        %v1309 = vshll.u32 2131351028, %v1300
        %v1310 = vshrl.u32 2102212464, %v1301
        %v1311 = vor.u32 %v1309, %v1310
        %v1312 = vshll.u32 2102212464, %v1300
        %v1313 = vshrl.u32 920167782, %v1301
        %v1314 = vor.u32 %v1312, %v1313
        %v1315 = vshll.u32 920167782, %v1300
        %v1316 = vshrl.u32 1326507024, %v1301
        %v1317 = vor.u32 %v1315, %v1316
        %vm1318 = vcmp.lt.s32.totalorder %v1299, 1
        %vm1319 = vcmp.lt.s32.totalorder %v1299, 2
        %vm1320 = vcmp.lt.s32.totalorder %v1299, 3
        %vm1321 = vcmp.lt.s32.totalorder %v1299, 4
        %v1322 = vsel %vm1318, %v1302, %v1305
        %v1323 = vsel %vm1321, %v1311, 2102212464
        %v1324 = vsel %vm1320, %v1308, %v1323
        %v1325 = vsel %vm1319, %v1322, %v1324
        %v1326 = vsel %vm1318, %v1305, %v1308
        %v1327 = vsel %vm1321, %v1314, 920167782
        %v1328 = vsel %vm1320, %v1311, %v1327
        %v1329 = vsel %vm1319, %v1326, %v1328
        %v1330 = vsel %vm1318, %v1308, %v1311
        %v1331 = vsel %vm1321, %v1317, 1326507024
        %v1332 = vsel %vm1320, %v1314, %v1331
        %v1333 = vsel %vm1319, %v1330, %v1332
        %v1334 = vshll.u32 %v1294, 8
        %v1335 = vmul.u32.u64.compose %v1334, %v1333
        %v1336 = vextract.low.u32 %v1335
        %v1337 = vextract.high.u32 %v1335
        %v1338 = vmul.u32.u64.compose %v1334, %v1329
        %v1339 = vextract.low.u32 %v1338
        %v1340 = vextract.high.u32 %v1338
        %v1341 = vmul.u32 %v1334, %v1325
        %v1342 = vadd.s32 %v1337, %v1339
        %vm1343 = vc.u32 %v1337, %v1339
        %v1344 = vadd.s32 %v1340, 1
        %v1345 = vsel %vm1343, %v1344, %v1340
        %v1346 = vadd.s32 %v1341, %v1345
        %v1347 = vadd.s32 %v1346, 536870912
        %v1348 = vshrl.u32 %v1347, 30
        %v1349 = vshll.u32 %v1348, 30
        %v1350 = vsub.s32 %v1346, %v1349
        %vm1351 = vcmp.lt.s32.totalorder %v1350, 0
        %v1352 = vsub.s32 0, %v1350
        %v1353 = vsel %vm1351, %v1352, %v1350
        %v1354 = vclz %v1353
        %v1355 = vsub.s32 %v1354, 2
        %vm1356 = vcmp.gt.s32.totalorder 0, %v1355
        %v1357 = vsel %vm1356, 0, %v1355
        %v1358 = vsub.s32 32, %v1357
        %v1359 = vshll.u32 %v1350, %v1357
        %v1360 = vshrl.u32 %v1342, %v1358
        %v1361 = vor.u32 %v1359, %v1360
        %v1362 = vsub.s32 4294967266, %v1357
        %v1363 = vadd.s32 %v1362, 127
        %v1364 = vshll.u32 %v1363, 23
        %v1365 = vor.u32 4788187, %v1364
        %v1366 = vand.u32 2147483647, %v1365
        %v1368 = vcvt.s32.f32 %v1361
        %v1369 = vmul.f32 %v1368, %v1366
        %v1370 = vxor.u32 %v1369, 2147483648
        %v1371 = vsel %vm1288, %v1370, %v1369
        %v1372 = vsub.s32 4, %v1348
        %v1373 = vsel %vm1288, %v1372, %v1348
        %v1374 = vsel %vm1287, %v1076, %v1371
        %v1375 = vsel %vm1287, 0, %v1373
        %v1376 = vcosq.f32.pop %v1374
        %v1377 = vsinq.f32.pop %v1374
        %vm1378 = vweird.f32 %v1076
        %v1379 = vand.u32 %v1375, 3
        %vm1380 = vcmp.lt.s32.totalorder %v1379, 2
        %vm1381 = vcmp.eq.s32.totalorder %v1379, 0
        %v1382 = vxor.u32 %v1377, 2147483648
        %v1383 = vsel %vm1381, %v1376, %v1382
        %vm1384 = vcmp.eq.s32.totalorder %v1379, 2
        %v1385 = vxor.u32 %v1376, 2147483648
        %v1386 = vsel %vm1384, %v1385, %v1377
        %v1387 = vsel %vm1380, %v1383, %v1386
        %v1388 = vsel %vm1378, nan, %v1387
        %v1389 = vand.u32 2147483647, %v1077
        %vm1390 = vcmp.le.f32.partialorder %v1389, 0.7853982
        %vm1391 = vcmp.lt.s32.totalorder %v1077, 0
        %v1392 = vand.u32 %v1077, 2139095040
        %v1393 = vshrl.u32 %v1392, 23
        %v1394 = vsub.s32 %v1393, 127
        %v1395 = vand.u32 2147483647, %v1077
        %v1396 = vand.u32 %v1395, 8388607
        %v1397 = vor.u32 %v1396, 8388608
        %v1398 = vsub.s32 0, %v1397
        %v1399 = vadd.s32 %v1394, 1
        %vm1400 = vcmp.gt.s32.totalorder %v1399, 0
        %v1401 = vsel %vm1400, %v1399, 0
        %v1402 = vshrl.u32 %v1401, 5
        %v1403 = vand.u32 %v1401, 31
        %v1404 = vsub.s32 32, %v1403
        %v1405 = vshrl.u32 683565275, %v1404
        %v1406 = vshll.u32 683565275, %v1403
        %v1407 = vshrl.u32 2475754826, %v1404
        %v1408 = vor.u32 %v1406, %v1407
        %v1409 = vshll.u32 2475754826, %v1403
        %v1410 = vshrl.u32 2131351028, %v1404
        %v1411 = vor.u32 %v1409, %v1410
        %v1412 = vshll.u32 2131351028, %v1403
        %v1413 = vshrl.u32 2102212464, %v1404
        %v1414 = vor.u32 %v1412, %v1413
        %v1415 = vshll.u32 2102212464, %v1403
        %v1416 = vshrl.u32 920167782, %v1404
        %v1417 = vor.u32 %v1415, %v1416
        %v1418 = vshll.u32 920167782, %v1403
        %v1419 = vshrl.u32 1326507024, %v1404
        %v1420 = vor.u32 %v1418, %v1419
        %vm1421 = vcmp.lt.s32.totalorder %v1402, 1
        %vm1422 = vcmp.lt.s32.totalorder %v1402, 2
        %vm1423 = vcmp.lt.s32.totalorder %v1402, 3
        %vm1424 = vcmp.lt.s32.totalorder %v1402, 4
        %v1425 = vsel %vm1421, %v1405, %v1408
        %v1426 = vsel %vm1424, %v1414, 2102212464
        %v1427 = vsel %vm1423, %v1411, %v1426
        %v1428 = vsel %vm1422, %v1425, %v1427
        %v1429 = vsel %vm1421, %v1408, %v1411
        %v1430 = vsel %vm1424, %v1417, 920167782
        %v1431 = vsel %vm1423, %v1414, %v1430
        %v1432 = vsel %vm1422, %v1429, %v1431
        %v1433 = vsel %vm1421, %v1411, %v1414
        %v1434 = vsel %vm1424, %v1420, 1326507024
        %v1435 = vsel %vm1423, %v1417, %v1434
        %v1436 = vsel %vm1422, %v1433, %v1435
        %v1437 = vshll.u32 %v1397, 8
        %v1438 = vmul.u32.u64.compose %v1437, %v1436
        %v1439 = vextract.low.u32 %v1438
        %v1440 = vextract.high.u32 %v1438
        %v1441 = vmul.u32.u64.compose %v1437, %v1432
        %v1442 = vextract.low.u32 %v1441
        %v1443 = vextract.high.u32 %v1441
        %v1444 = vmul.u32 %v1437, %v1428
        %v1445 = vadd.s32 %v1440, %v1442
        %vm1446 = vc.u32 %v1440, %v1442
        %v1447 = vadd.s32 %v1443, 1
        %v1448 = vsel %vm1446, %v1447, %v1443
        %v1449 = vadd.s32 %v1444, %v1448
        %v1450 = vadd.s32 %v1449, 536870912
        %v1451 = vshrl.u32 %v1450, 30
        %v1452 = vshll.u32 %v1451, 30
        %v1453 = vsub.s32 %v1449, %v1452
        %vm1454 = vcmp.lt.s32.totalorder %v1453, 0
        %v1455 = vsub.s32 0, %v1453
        %v1456 = vsel %vm1454, %v1455, %v1453
        %v1457 = vclz %v1456
        %v1458 = vsub.s32 %v1457, 2
        %vm1459 = vcmp.gt.s32.totalorder 0, %v1458
        %v1460 = vsel %vm1459, 0, %v1458
        %v1461 = vsub.s32 32, %v1460
        %v1462 = vshll.u32 %v1453, %v1460
        %v1463 = vshrl.u32 %v1445, %v1461
        %v1464 = vor.u32 %v1462, %v1463
        %v1465 = vsub.s32 4294967266, %v1460
        %v1466 = vadd.s32 %v1465, 127
        %v1467 = vshll.u32 %v1466, 23
        %v1468 = vor.u32 4788187, %v1467
        %v1469 = vand.u32 2147483647, %v1468
        %v1471 = vcvt.s32.f32 %v1464
        %v1472 = vmul.f32 %v1471, %v1469
        %v1473 = vxor.u32 %v1472, 2147483648
        %v1474 = vsel %vm1391, %v1473, %v1472
        %v1475 = vsub.s32 4, %v1451
        %v1476 = vsel %vm1391, %v1475, %v1451
        %v1477 = vsel %vm1390, %v1077, %v1474
        %v1478 = vsel %vm1390, 0, %v1476
        %v1479 = vcosq.f32.pop %v1477
        %v1480 = vsinq.f32.pop %v1477
        %vm1481 = vweird.f32 %v1077
        %v1482 = vand.u32 %v1478, 3
        %vm1483 = vcmp.lt.s32.totalorder %v1482, 2
        %vm1484 = vcmp.eq.s32.totalorder %v1482, 0
        %v1485 = vxor.u32 %v1480, 2147483648
        %v1486 = vsel %vm1484, %v1479, %v1485
        %vm1487 = vcmp.eq.s32.totalorder %v1482, 2
        %v1488 = vxor.u32 %v1479, 2147483648
        %v1489 = vsel %vm1487, %v1488, %v1480
        %v1490 = vsel %vm1483, %v1486, %v1489
        %v1491 = vsel %vm1481, nan, %v1490
        %v1492 = vmul.f32 %v1388, 2.0
        %v1493 = vmul.f32 %v1491, 2.0
        %v1494 = vmul.f32 %v1181, %v1074
        %v1495 = vmul.f32 %v1285, %v1075
        %s1496 = scalar_lea.vmem %s240, 16 [#allocation6]
        %1497 = vst [vmem:[%s1496] sm:$0xff] %v1494
        %1498 = vst [vmem:[%s1496 + $0x8] sm:$0xff] %v1495
        %v1499 = vmul.f32 %v1492, %v1181
        %v1500 = vmul.f32 %v1493, %v1285
        %v1501 = vmul.f32 %v1499, %v1074
        %v1502 = vmul.f32 %v1500, %v1075
        %s1503 = scalar_lea.vmem %s240, %s1054 [#allocation6]
        %1504 = vst [vmem:[%s1503] sm:$0xff] %v1501
        %1505 = vst [vmem:[%s1503 + $0x8] sm:$0xff] %v1502
        %v1506 = vmul.f32 %v1492, %v1499
        %v1507 = vmul.f32 %v1493, %v1500
        %v1508 = vsub.f32 %v1506, %v1181
        %v1509 = vsub.f32 %v1507, %v1285
        %v1510 = vmul.f32 %v1508, %v1074
        %v1511 = vmul.f32 %v1509, %v1075
        %s1512 = scalar_lea.vmem %s240, %s1060 [#allocation6]
        %1513 = vst [vmem:[%s1512] sm:$0xff] %v1510
        %1514 = vst [vmem:[%s1512 + $0x8] sm:$0xff] %v1511
        %v1515 = vmul.f32 %v1492, %v1508
        %v1516 = vmul.f32 %v1493, %v1509
        %v1517 = vsub.f32 %v1515, %v1499
        %v1518 = vsub.f32 %v1516, %v1500
        %v1519 = vmul.f32 %v1517, %v1074
        %v1520 = vmul.f32 %v1518, %v1075
        %s1521 = sadd.s32 16, 96
        %s1522 = scalar_lea.vmem %s240, %s1521 [#allocation6]
        %1523 = vst [vmem:[%s1522] sm:$0xff] %v1519
        %1524 = vst [vmem:[%s1522 + $0x8] sm:$0xff] %v1520
        %v1525 = vmul.f32 %v1492, %v1517
        %v1526 = vmul.f32 %v1493, %v1518
        %v1527 = vsub.f32 %v1525, %v1508
        %v1528 = vsub.f32 %v1526, %v1509
        %v1529 = vmul.f32 %v1527, %v1074
        %v1530 = vmul.f32 %v1528, %v1075
        %s1531 = sadd.s32 16, 128
        %s1532 = scalar_lea.vmem %s240, %s1531 [#allocation6]
        %1533 = vst [vmem:[%s1532] sm:$0xff] %v1529
        %1534 = vst [vmem:[%s1532 + $0x8] sm:$0xff] %v1530
        %v1535 = vmul.f32 %v1492, %v1527
        %v1536 = vmul.f32 %v1493, %v1528
        %v1537 = vsub.f32 %v1535, %v1517
        %v1538 = vsub.f32 %v1536, %v1518
        %v1539 = vmul.f32 %v1537, %v1074
        %v1540 = vmul.f32 %v1538, %v1075
        %s1541 = sadd.s32 16, 160
        %s1542 = scalar_lea.vmem %s240, %s1541 [#allocation6]
        %1543 = vst [vmem:[%s1542] sm:$0xff] %v1539
        %1544 = vst [vmem:[%s1542 + $0x8] sm:$0xff] %v1540
        %v1545 = vmul.f32 %v1492, %v1537
        %v1546 = vmul.f32 %v1493, %v1538
        %v1547 = vsub.f32 %v1545, %v1527
        %v1548 = vsub.f32 %v1546, %v1528
        %v1549 = vmul.f32 %v1547, %v1074
        %v1550 = vmul.f32 %v1548, %v1075
        %s1551 = sadd.s32 16, 192
        %s1552 = scalar_lea.vmem %s240, %s1551 [#allocation6]
        %1553 = vst [vmem:[%s1552] sm:$0xff] %v1549
        %1554 = vst [vmem:[%s1552 + $0x8] sm:$0xff] %v1550
        %v1555 = vmul.f32 %v1492, %v1547
        %v1556 = vmul.f32 %v1493, %v1548
        %v1557 = vsub.f32 %v1555, %v1537
        %v1558 = vsub.f32 %v1556, %v1538
        %v1559 = vmul.f32 %v1557, %v1074
        %v1560 = vmul.f32 %v1558, %v1075
        %s1561 = sadd.s32 16, 224
        %s1562 = scalar_lea.vmem %s240, %s1561 [#allocation6]
        %1563 = vst [vmem:[%s1562] sm:$0xff] %v1559
        %1564 = vst [vmem:[%s1562 + $0x8] sm:$0xff] %v1560
        %v1565 = vmul.f32 %v1492, %v1557
        %v1566 = vmul.f32 %v1493, %v1558
        %v1567 = vsub.f32 %v1565, %v1547
        %v1568 = vsub.f32 %v1566, %v1548
        %v1569 = vmul.f32 %v1567, %v1074
        %v1570 = vmul.f32 %v1568, %v1075
        %s1571 = sadd.s32 16, 256
        %s1572 = scalar_lea.vmem %s240, %s1571 [#allocation6]
        %1573 = vst [vmem:[%s1572] sm:$0xff] %v1569
        %1574 = vst [vmem:[%s1572 + $0x8] sm:$0xff] %v1570
        %v1575 = vmul.f32 %v1492, %v1567
        %v1576 = vmul.f32 %v1493, %v1568
        %v1577 = vsub.f32 %v1575, %v1557
        %v1578 = vsub.f32 %v1576, %v1558
        %v1579 = vmul.f32 %v1577, %v1074
        %v1580 = vmul.f32 %v1578, %v1075
        %s1581 = sadd.s32 16, 288
        %s1582 = scalar_lea.vmem %s240, %s1581 [#allocation6]
        %1583 = vst [vmem:[%s1582] sm:$0xff] %v1579
        %1584 = vst [vmem:[%s1582 + $0x8] sm:$0xff] %v1580
        %v1585 = vmul.f32 %v1492, %v1577
        %v1586 = vmul.f32 %v1493, %v1578
        %v1587 = vsub.f32 %v1585, %v1567
        %v1588 = vsub.f32 %v1586, %v1568
        %v1589 = vmul.f32 %v1587, %v1074
        %v1590 = vmul.f32 %v1588, %v1075
        %s1591 = sadd.s32 16, 320
        %s1592 = scalar_lea.vmem %s240, %s1591 [#allocation6]
        %1593 = vst [vmem:[%s1592] sm:$0xff] %v1589
        %1594 = vst [vmem:[%s1592 + $0x8] sm:$0xff] %v1590
        %v1595 = vmul.f32 %v1492, %v1587
        %v1596 = vmul.f32 %v1493, %v1588
        %v1597 = vsub.f32 %v1595, %v1577
        %v1598 = vsub.f32 %v1596, %v1578
        %v1599 = vmul.f32 %v1597, %v1074
        %v1600 = vmul.f32 %v1598, %v1075
        %s1601 = sadd.s32 16, 352
        %s1602 = scalar_lea.vmem %s240, %s1601 [#allocation6]
        %1603 = vst [vmem:[%s1602] sm:$0xff] %v1599
        %1604 = vst [vmem:[%s1602 + $0x8] sm:$0xff] %v1600
        %v1605 = vmul.f32 %v1492, %v1597
        %v1606 = vmul.f32 %v1493, %v1598
        %v1607 = vsub.f32 %v1605, %v1587
        %v1608 = vsub.f32 %v1606, %v1588
        %v1609 = vmul.f32 %v1607, %v1074
        %v1610 = vmul.f32 %v1608, %v1075
        %s1611 = sadd.s32 16, 384
        %s1612 = scalar_lea.vmem %s240, %s1611 [#allocation6]
        %1613 = vst [vmem:[%s1612] sm:$0xff] %v1609
        %1614 = vst [vmem:[%s1612 + $0x8] sm:$0xff] %v1610
        %v1615 = vmul.f32 %v1492, %v1607
        %v1616 = vmul.f32 %v1493, %v1608
        %v1617 = vsub.f32 %v1615, %v1597
        %v1618 = vsub.f32 %v1616, %v1598
        %v1619 = vmul.f32 %v1617, %v1074
        %v1620 = vmul.f32 %v1618, %v1075
        %s1621 = sadd.s32 16, 416
        %s1622 = scalar_lea.vmem %s240, %s1621 [#allocation6]
        %1623 = vst [vmem:[%s1622] sm:$0xff] %v1619
        %1624 = vst [vmem:[%s1622 + $0x8] sm:$0xff] %v1620
        %v1625 = vmul.f32 %v1492, %v1617
        %v1626 = vmul.f32 %v1493, %v1618
        %v1627 = vsub.f32 %v1625, %v1607
        %v1628 = vsub.f32 %v1626, %v1608
        %v1629 = vmul.f32 %v1627, %v1074
        %v1630 = vmul.f32 %v1628, %v1075
        %s1631 = sadd.s32 16, 448
        %s1632 = scalar_lea.vmem %s240, %s1631 [#allocation6]
        %1633 = vst [vmem:[%s1632] sm:$0xff] %v1629
        %1634 = vst [vmem:[%s1632 + $0x8] sm:$0xff] %v1630
        %v1635 = vmul.f32 %v1492, %v1627
        %v1636 = vmul.f32 %v1493, %v1628
        %v1637 = vsub.f32 %v1635, %v1617
        %v1638 = vsub.f32 %v1636, %v1618
        %v1639 = vmul.f32 %v1637, %v1074
        %v1640 = vmul.f32 %v1638, %v1075
        %s1641 = sadd.s32 16, 480
        %s1642 = scalar_lea.vmem %s240, %s1641 [#allocation6]
        %1643 = vst [vmem:[%s1642] sm:$0xff] %v1639
        %1644 = vst [vmem:[%s1642 + $0x8] sm:$0xff] %v1640
        %v1645 = vmul.f32 %v1492, %v1637
        %v1646 = vmul.f32 %v1493, %v1638
        %v1647 = vsub.f32 %v1645, %v1627
        %v1648 = vsub.f32 %v1646, %v1628
        %v1649 = vmul.f32 %v1647, %v1074
        %v1650 = vmul.f32 %v1648, %v1075
        %s1651 = sadd.s32 16, 512
        %s1652 = scalar_lea.vmem %s240, %s1651 [#allocation6]
        %1653 = vst [vmem:[%s1652] sm:$0xff] %v1649
        %1654 = vst [vmem:[%s1652 + $0x8] sm:$0xff] %v1650
        %v1655 = vmul.f32 %v1492, %v1647
        %v1656 = vmul.f32 %v1493, %v1648
        %v1657 = vsub.f32 %v1655, %v1637
        %v1658 = vsub.f32 %v1656, %v1638
        %v1659 = vmul.f32 %v1657, %v1074
        %v1660 = vmul.f32 %v1658, %v1075
        %s1661 = sadd.s32 16, 544
        %s1662 = scalar_lea.vmem %s240, %s1661 [#allocation6]
        %1663 = vst [vmem:[%s1662] sm:$0xff] %v1659
        %1664 = vst [vmem:[%s1662 + $0x8] sm:$0xff] %v1660
        %v1665 = vmul.f32 %v1492, %v1657
        %v1666 = vmul.f32 %v1493, %v1658
        %v1667 = vsub.f32 %v1665, %v1647
        %v1668 = vsub.f32 %v1666, %v1648
        %v1669 = vmul.f32 %v1667, %v1074
        %v1670 = vmul.f32 %v1668, %v1075
        %s1671 = sadd.s32 16, 576
        %s1672 = scalar_lea.vmem %s240, %s1671 [#allocation6]
        %1673 = vst [vmem:[%s1672] sm:$0xff] %v1669
        %1674 = vst [vmem:[%s1672 + $0x8] sm:$0xff] %v1670
        %v1675 = vmul.f32 %v1492, %v1667
        %v1676 = vmul.f32 %v1493, %v1668
        %v1677 = vsub.f32 %v1675, %v1657
        %v1678 = vsub.f32 %v1676, %v1658
        %v1679 = vmul.f32 %v1677, %v1074
        %v1680 = vmul.f32 %v1678, %v1075
        %s1681 = sadd.s32 16, 608
        %s1682 = scalar_lea.vmem %s240, %s1681 [#allocation6]
        %1683 = vst [vmem:[%s1682] sm:$0xff] %v1679
        %1684 = vst [vmem:[%s1682 + $0x8] sm:$0xff] %v1680
        %s1685 = sand.u32 %s96, 1
        %s1686 = scalar_lea.sflag [#allocation3], %s1685
        %s1687 = sand.u32 %s96, 1
        %s1688 = smul.addr %s1687, 32
        %s1689 = scalar_lea.vmem [#allocation2], %s1688
        %s1690 = sand.u32 %s22, 1
        %s1691 = scalar_lea.sflag [#allocation5], %s1690
        %s1692 = sand.u32 %s124, 1
        %s1693 = smul.addr %s1692, 96
        %s1694 = scalar_lea.vmem [#allocation4], %s1693
        %s1695 = sand.u32 %s22, 1
        %s1696 = scalar_lea.sflag [#allocation5], %s1695
        %s1697 = sand.u32 %s152, 1
        %s1698 = smul.addr %s1697, 640
        %s1699 = scalar_lea.vmem [#allocation6], %s1698
        // Predicated region
        $region29: #{tpu_custom_call.1} parent=27 // pred_check
          %p1700 = pneg %p106
        $region30: #{tpu_custom_call.1} parent=27 // pred_check_branch
          %1702 = sbr.rel (%p1700) target = $region32
        $region31: #{tpu_custom_call.1} parent=27 // pred_region
          %s1703 = smul.u32 4, %s26
          %s1705 = ssub.s32 512, 512
          %1706 = vsyncadd %s1686, %s1705
          %s1707 = sadd.s32 %s27, %s1703
          %s1708 = smul.addr %s1707, 128
          %s1709 = scalar_lea.hbm %s2, %s1708
          %s1710 = sshll.u32 %s1689, 4
          %s1711 = int_to_ptr.vmem [resolvable:$true] %s1710
          %1716 = dma.vmem_to_hbm [thread:$0]  %s1711, 512, %s1709, %s1686, 128, 128, 8
        $region32: #{tpu_custom_call.1} parent=27 // pred_fallthru
          _
        // Predicated region
        $region33: #{tpu_custom_call.1} parent=27 // pred_check
          %p1717 = pneg %p134
        $region34: #{tpu_custom_call.1} parent=27 // pred_check_branch
          %1719 = sbr.rel (%p1717) target = $region36
        $region35: #{tpu_custom_call.1} parent=27 // pred_region
          #allocation8 [shape = 'u32[6]{0}', space=smem, size = 0x18, scoped, tag = 'DMA stride descriptor']
          %s1720 = smul.u32 4, %s26
          %s1722 = ssub.s32 1536, 1536
          %1723 = vsyncadd %s1691, %s1722
          %s1724 = sadd.s32 %s27, %s1720
          %s1725 = smul.addr %s1724, 128
          %s1726 = scalar_lea.hbm %s3, %s1725
          %s1728 = sshll.u32 1, 14
          %s1729 = sxor.u32 4294967295, %s1728
          %s1732 = sshll.u32 7, 18
          %s1733 = sxor.u32 4294967295, %s1732
          %s1734 = sand.u32 0, %s1733
          %s1736 = sor.u32 %s1734, 0
          %s1738 = sshll.u32 3, 24
          %s1739 = sxor.u32 4294967295, %s1738
          %s1740 = sand.u32 %s1736, %s1739
          %s1742 = sor.u32 %s1740, 0
          %s1743 = sshll.u32 %s1694, 4
          %s1744 = int_to_ptr.vmem [resolvable:$true] %s1743
          %1750 = sst [smem:[#allocation8]] 512
          %s1751 = scalar_lea.smem [#allocation8], 1
          %1752 = sst [smem:[%s1751]] 1024
          %s1753 = scalar_lea.smem [#allocation8], 2
          %1754 = sst [smem:[%s1753]] 4
          %s1755 = scalar_lea.smem [#allocation8], 3
          %1756 = sst [smem:[%s1755]] 128
          %s1757 = scalar_lea.smem [#allocation8], 4
          %1758 = sst [smem:[%s1757]] 128
          %s1759 = scalar_lea.smem [#allocation8], 5
          %1760 = sst [smem:[%s1759]] 8
          %1762 = dma.general %s1744, 1536, %s1726, %s1691, [#allocation7], [#allocation8], %s1742, 0
        $region36: #{tpu_custom_call.1} parent=27 // pred_fallthru
          _
        // Predicated region
        $region37: #{tpu_custom_call.1} parent=27 // pred_check
          %p1763 = pneg %p162
        $region38: #{tpu_custom_call.1} parent=27 // pred_check_branch
          %1765 = sbr.rel (%p1763) target = $region40
        $region39: #{tpu_custom_call.1} parent=27 // pred_region
          #allocation10 [shape = 'u32[6]{0}', space=smem, size = 0x18, scoped, tag = 'DMA stride descriptor']
          %s1766 = smul.u32 4, %s26
          %s1768 = ssub.s32 10240, 10240
          %1769 = vsyncadd %s1696, %s1768
          %s1770 = sadd.s32 %s27, %s1766
          %s1771 = smul.addr %s1770, 128
          %s1772 = scalar_lea.hbm %s4, %s1771
          %s1774 = sshll.u32 1, 14
          %s1775 = sxor.u32 4294967295, %s1774
          %s1778 = sshll.u32 7, 18
          %s1779 = sxor.u32 4294967295, %s1778
          %s1780 = sand.u32 0, %s1779
          %s1782 = sor.u32 %s1780, 0
          %s1784 = sshll.u32 3, 24
          %s1785 = sxor.u32 4294967295, %s1784
          %s1786 = sand.u32 %s1782, %s1785
          %s1788 = sor.u32 %s1786, 0
          %s1789 = sshll.u32 %s1699, 4
          %s1790 = int_to_ptr.vmem [resolvable:$true] %s1789
          %1796 = sst [smem:[#allocation10]] 512
          %s1797 = scalar_lea.smem [#allocation10], 1
          %1798 = sst [smem:[%s1797]] 1024
          %s1799 = scalar_lea.smem [#allocation10], 2
          %1800 = sst [smem:[%s1799]] 4
          %s1801 = scalar_lea.smem [#allocation10], 3
          %1802 = sst [smem:[%s1801]] 128
          %s1803 = scalar_lea.smem [#allocation10], 4
          %1804 = sst [smem:[%s1803]] 128
          %s1805 = scalar_lea.smem [#allocation10], 5
          %1806 = sst [smem:[%s1805]] 8
          %1808 = dma.general %s1790, 10240, %s1772, %s1696, [#allocation9], [#allocation10], %s1788, 0
        $region40: #{tpu_custom_call.1} parent=27 // pred_fallthru
          _
      $region28: #{tpu_custom_call.1} parent=5 // pred_fallthru
        _
      %p1809 = scmp.le.s32.totalorder 2, %s17
      // Predicated region
      $region41: #{tpu_custom_call.1} parent=5 // pred_check
        %p1810 = pneg %p1809
      $region42: #{tpu_custom_call.1} parent=5 // pred_check_branch
        %1812 = sbr.rel (%p1810) target = $region44
      $region43: #{tpu_custom_call.1} parent=5 // pred_region
        %s1813 = ssub.s32 %s17, 2
        // Predicated region
        $region45: #{tpu_custom_call.1} parent=43 // pred_check
          %p1814 = pneg %p112
        $region46: #{tpu_custom_call.1} parent=43 // pred_check_branch
          %1816 = sbr.rel (%p1814) target = $region48
        $region47: #{tpu_custom_call.1} parent=43 // pred_region
          %s1817 = sand.u32 %s97, 1
          %s1818 = scalar_lea.sflag [#allocation3], %s1817
          %s1819 = sand.u32 %s97, 1
          %s1820 = smul.addr %s1819, 32
          %s1821 = scalar_lea.vmem [#allocation2], %s1820
          %1822 = dma.done %s1818, 512
        $region48: #{tpu_custom_call.1} parent=43 // pred_fallthru
          _
        // Predicated region
        $region49: #{tpu_custom_call.1} parent=43 // pred_check
          %p1823 = pneg %p140
        $region50: #{tpu_custom_call.1} parent=43 // pred_check_branch
          %1825 = sbr.rel (%p1823) target = $region52
        $region51: #{tpu_custom_call.1} parent=43 // pred_region
          %s1826 = sand.u32 %s23, 1
          %s1827 = scalar_lea.sflag [#allocation5], %s1826
          %s1828 = sand.u32 %s125, 1
          %s1829 = smul.addr %s1828, 96
          %s1830 = scalar_lea.vmem [#allocation4], %s1829
          %1831 = dma.done %s1827, 1536
        $region52: #{tpu_custom_call.1} parent=43 // pred_fallthru
          _
        // Predicated region
        $region53: #{tpu_custom_call.1} parent=43 // pred_check
          %p1832 = pneg %p168
        $region54: #{tpu_custom_call.1} parent=43 // pred_check_branch
          %1834 = sbr.rel (%p1832) target = $region56
        $region55: #{tpu_custom_call.1} parent=43 // pred_region
          %s1835 = sand.u32 %s23, 1
          %s1836 = scalar_lea.sflag [#allocation5], %s1835
          %s1837 = sand.u32 %s153, 1
          %s1838 = smul.addr %s1837, 640
          %s1839 = scalar_lea.vmem [#allocation6], %s1838
          %1840 = dma.done %s1836, 10240
        $region56: #{tpu_custom_call.1} parent=43 // pred_fallthru
          _
      $region44: #{tpu_custom_call.1} parent=5 // pred_fallthru
        _
    $region6: #{tpu_custom_call.1} parent=1 // loop_footer
      %s21 = sadd.s32 1, %s17
    $region7: #{tpu_custom_call.1} parent=1 // loop_footer_branch
      %16 = sbr.rel target = $region3
    $region8: #{tpu_custom_call.1} parent=1 // loop_exit
      _
    %1841 = vsyncpa [#allocation3], 1
    %s1842 = scalar_lea.sflag [#allocation3], 1
    %1843 = vsyncpa %s1842, 1
    %1844 = vsyncpa [#allocation5], 1
    %s1845 = scalar_lea.sflag [#allocation5], 1
    %1846 = vsyncpa %s1845, 1

</llo_original>
